<compile_context>
chip_gen: v5e
topology: v5e:2x2
jax: 0.10.0
libtpu: 0.0.40
codegen_flags: <defaults>
</compile_context>

<pallas_src>
from functools import partial

import jax
import jax.numpy as jnp
from jax import lax
from jax.experimental import pallas as pl
from jax.experimental.pallas import tpu as pltpu

N_OUT = 5            # linear out_features; also the broadcast dim of `x + weight`
F_IN = 4             # linear in_features
TOP_K = 3
LANES = 128
MAX_BLOCK_ROWS = 256  # 256*128 = 32768 batch elems / step; x block ~2.6 MB
                      # (v5e cap per review; within the 256-512 v6e/v7x range)


def _cdiv(a, b):
    return -(-a // b)


def _round_up(a, m):
    return _cdiv(a, m) * m


def mymodule_kernel(x_ref, w_ref, c_ref, vals_ref, idx_ref):
    """x_ref:    VMEM (20, BR, 128) f32 — plane p = n*4+f holds x[:, n, f],
                 batch packed on (sublane, lane).
       w_ref:    SMEM (5, 4) f32 (linear weight)
       c_ref:    SMEM (5, 5) f32, c[n, m] = w[n]·w[m] + b[m]
       vals_ref: VMEM (3, BR, 128) f32
       idx_ref:  VMEM (3, BR, 128) int8."""
    # Weights / folded constants as SMEM scalars (sreg path; no vregs burned on
    # tiny, >95%-padding VMEM tiles).
    w = [[w_ref[m, f] for f in range(F_IN)] for m in range(N_OUT)]

    # sums[n] = sum_m relu( sum_f x[n,f] * w[m,f] + c[n,m] )
    # Fully unrolled pure-VPU multiply-adds; each op covers 1024 batch elems.
    sums = []
    for n in range(N_OUT):
        xp = [x_ref[n * F_IN + f] for f in range(F_IN)]      # 4 (BR,128) planes
        row = None
        for m in range(N_OUT):
            z = xp[0] * w[m][0] + c_ref[n, m]
            for f in range(1, F_IN):
                z = z + xp[f] * w[m][f]
            r = jnp.maximum(z, 0.0)
            row = r if row is None else row + r
        sums.append(row)                                     # (BR, 128)

    # Stable top-3 of 5 planes: sort the first three, then insert planes 3, 4.
    # Strict '>' everywhere => ties keep the lower index first (matches
    # jax.lax.top_k / torch.topk).  No -inf masking pass.
    def sort2(av, ai, bv, bi):
        t = bv > av
        return (jnp.where(t, bv, av), jnp.where(t, bi, ai),
                jnp.where(t, av, bv), jnp.where(t, ai, bi))

    v0, i0, v1, i1 = sort2(sums[0], jnp.int32(0), sums[1], jnp.int32(1))
    v1, i1, v2, i2 = sort2(v1, i1, sums[2], jnp.int32(2))
    v0, i0, v1, i1 = sort2(v0, i0, v1, i1)

    for n in (3, 4):
        v, i = sums[n], jnp.int32(n)
        g0 = v > v0
        g1 = v > v1
        g2 = v > v2
        v0, i0, v1, i1, v2, i2 = (
            jnp.where(g0, v, v0),
            jnp.where(g0, i, i0),
            jnp.where(g0, v0, jnp.where(g1, v, v1)),
            jnp.where(g0, i0, jnp.where(g1, i, i1)),
            jnp.where(g1, v1, jnp.where(g2, v, v2)),
            jnp.where(g1, i1, jnp.where(g2, i, i2)),
        )

    # Lane-dense stores; indices fit in int8 (0..4).
    vals_ref[0] = v0
    vals_ref[1] = v1
    vals_ref[2] = v2
    idx_ref[0] = i0.astype(jnp.int8)
    idx_ref[1] = i1.astype(jnp.int8)
    idx_ref[2] = i2.astype(jnp.int8)


@partial(jax.jit, static_argnames=("max_block_rows", "lane_major_output"))
def mymodule_forward(x, weight, bias, *, max_block_rows=MAX_BLOCK_ROWS,
                     lane_major_output=False):
    """x: (B, 5, 4); weight: (5, 4); bias: (5,).
       Default: returns (values (B, 3) f32, indices (B, 3) i32)  [torch layout].
       lane_major_output=True: returns the kernel-native lane-dense layout
       (values (3, B) f32, indices (3, B) i8) with no output relayout."""
    B, N, F = x.shape
    assert (N, F) == (N_OUT, F_IN) and weight.shape == (N, F) and bias.shape == (N,)
    assert max_block_rows % 32 == 0
    x = x.astype(jnp.float32)
    weight = weight.astype(jnp.float32)
    bias = bias.astype(jnp.float32)

    # Fold the `x + W` broadcast add and the bias into one (5,5) table:
    #   c[n, m] = dot(w[n], w[m]) + b[m]   (exact f32 elementwise, no MXU)
    c_table = jnp.sum(weight[:, None, :] * weight[None, :, :], axis=-1) + bias[None, :]

    # Block sizing: clamp to the real row count for small B (small-batch path),
    # keep block_rows a multiple of 32 (int8 output tiling), balance blocks.
    rows_needed = _cdiv(B, LANES)
    nblocks = _cdiv(rows_needed, max_block_rows)
    block_rows = _round_up(_cdiv(rows_needed, nblocks), 32)
    rows = block_rows * nblocks
    b_pad = rows * LANES

    # Batch-major -> lane-major relayout: (B, 5, 4) -> (20, rows, 128) so every
    # vreg in the kernel holds 1024 distinct batch elements.
    # Ideally the producer emits this (20, B) layout directly;
    # allow_input_fusion below lets XLA try to fuse this relayout into the call.
    xt = x.reshape(B, N_OUT * F_IN).T                       # (20, B)
    if b_pad != B:
        xt = jnp.pad(xt, ((0, 0), (0, b_pad - B)))
    xt = xt.reshape(N_OUT * F_IN, rows, LANES)

    cost = pl.CostEstimate(
        flops=int(b_pad) * (2 * N_OUT * N_OUT * F_IN + 3 * N_OUT * N_OUT
                            + 6 * TOP_K * N_OUT),
        transcendentals=0,
        bytes_accessed=int(b_pad) * (N_OUT * F_IN * 4 + TOP_K * (4 + 1))
                       + weight.size * 4 + c_table.size * 4,
    )

    vals, idx8 = pl.pallas_call(
        mymodule_kernel,
        out_shape=(
            jax.ShapeDtypeStruct((TOP_K, rows, LANES), jnp.float32),
            jax.ShapeDtypeStruct((TOP_K, rows, LANES), jnp.int8),
        ),
        grid=(nblocks,),
        in_specs=[
            pl.BlockSpec((N_OUT * F_IN, block_rows, LANES), lambda i: (0, i, 0)),
            pl.BlockSpec(memory_space=pltpu.MemorySpace.SMEM),   # weight scalars
            pl.BlockSpec(memory_space=pltpu.MemorySpace.SMEM),   # c table scalars
        ],
        out_specs=(
            pl.BlockSpec((TOP_K, block_rows, LANES), lambda i: (0, i, 0)),
            pl.BlockSpec((TOP_K, block_rows, LANES), lambda i: (0, i, 0)),
        ),
        compiler_params=pltpu.CompilerParams(
            dimension_semantics=("parallel",),
            # Let XLA fuse the x relayout into the pallas_call input instead of
            # materializing the transposed copy in HBM (review suggestion).
            allow_input_fusion=[True, False, False],
        ),
        cost_estimate=cost,
    )(xt, weight, c_table)

    if lane_major_output:
        return (vals.reshape(TOP_K, b_pad)[:, :B],
                idx8.reshape(TOP_K, b_pad)[:, :B])

    # PyTorch layout (B, 3); slice + transpose + upcast fuse into one XLA op.
    # Note: torch.topk returns int64 indices; we return int32 (JAX default x32).
    vals_out = vals.reshape(TOP_K, b_pad)[:, :B].T
    idx_out = idx8.reshape(TOP_K, b_pad)[:, :B].T.astype(jnp.int32)
    return vals_out, idx_out


def _reference(x, weight, bias):
    s = x + weight[None, :, :]
    z = jnp.einsum("bnf,mf->bnm", s, weight,
                   precision=lax.Precision.HIGHEST) + bias[None, None, :]
    sums = jnp.sum(jnp.maximum(z, 0.0), axis=-1)
    vals, idx = lax.top_k(sums, TOP_K)
    return vals, idx, sums


if __name__ == "__main__":
    key = jax.random.PRNGKey(0)
    kx, kw, kb, kp, kx2 = jax.random.split(key, 5)

    # Deterministic parameter init (mirrors nn.Linear uniform(-1/sqrt(F), 1/sqrt(F)))
    bound = 1.0 / jnp.sqrt(jnp.float32(F_IN))
    weight = jax.random.uniform(kw, (N_OUT, F_IN), jnp.float32, -bound, bound)
    bias = jax.random.uniform(kb, (N_OUT,), jnp.float32, -bound, bound)
    _param = jax.random.uniform(kp, (3, 4), jnp.float32)  # self.param: unused in forward

    # --- small-shape check (B=2, single grid step), exact index match ---
    x = jax.random.uniform(kx, (2, N_OUT, F_IN), jnp.float32)
    vals, idx = mymodule_forward(x, weight, bias)
    jax.block_until_ready((vals, idx))

    ref_vals, ref_idx, _ = _reference(x, weight, bias)
    assert vals.shape == (2, TOP_K) and idx.shape == (2, TOP_K)
    assert jnp.allclose(vals, ref_vals, atol=1e-4, rtol=1e-4), (vals, ref_vals)
    assert jnp.array_equal(idx, ref_idx.astype(jnp.int32)), (idx, ref_idx)

    # --- multi-block path check (grid > 1, partial last block) ---
    x2 = jax.random.uniform(kx2, (8197, N_OUT, F_IN), jnp.float32)
    vals2, idx2 = mymodule_forward(x2, weight, bias, max_block_rows=32)
    jax.block_until_ready((vals2, idx2))

    ref_vals2, ref_idx2, sums2 = _reference(x2, weight, bias)
    assert jnp.allclose(vals2, ref_vals2, atol=1e-4, rtol=1e-4)
    # Index check tolerant to f32 near-ties: the sums selected by the kernel's
    # indices must reproduce the reference top-k values rank-by-rank.
    picked = jnp.take_along_axis(sums2, idx2, axis=1)
    assert jnp.allclose(picked, ref_vals2, atol=1e-4, rtol=1e-4)

    print("KERNEL_OK")
</pallas_src>

<mosaic_0001>
module attributes {stable_mosaic.version = 11 : i64} {
  func.func @mymodule_kernel(%arg0: i32, %arg1: memref<20x32x128xf32, #tpu.memory_space<vmem>>, %arg2: memref<5x4xf32, #tpu.memory_space<smem>>, %arg3: memref<5x5xf32, #tpu.memory_space<smem>>, %arg4: memref<3x32x128xf32, #tpu.memory_space<vmem>>, %arg5: memref<3x32x128xi8, #tpu.memory_space<vmem>>) attributes {dimension_semantics = [#tpu.dimension_semantics<parallel>], iteration_bounds = array<i64: 1>, scalar_prefetch = 0 : i64, scratch_operands = 0 : i64, tpu.core_type = #tpu.core_type<tc>, window_params = [{transform_indices = @transform_0, window_bounds = array<i64: 20, 32, 128>}, {transform_indices = @transform_1, window_bounds = array<i64: 5, 4>}, {transform_indices = @transform_2, window_bounds = array<i64: 5, 5>}, {transform_indices = @transform_3, window_bounds = array<i64: 3, 32, 128>}, {transform_indices = @transform_4, window_bounds = array<i64: 3, 32, 128>}]} {
    %c0 = arith.constant 0 : index
    %c0_0 = arith.constant 0 : index
    %0 = memref.load %arg2[%c0, %c0_0] : memref<5x4xf32, #tpu.memory_space<smem>>
    %c0_1 = arith.constant 0 : index
    %c1 = arith.constant 1 : index
    %1 = memref.load %arg2[%c0_1, %c1] : memref<5x4xf32, #tpu.memory_space<smem>>
    %c0_2 = arith.constant 0 : index
    %c2 = arith.constant 2 : index
    %2 = memref.load %arg2[%c0_2, %c2] : memref<5x4xf32, #tpu.memory_space<smem>>
    %c0_3 = arith.constant 0 : index
    %c3 = arith.constant 3 : index
    %3 = memref.load %arg2[%c0_3, %c3] : memref<5x4xf32, #tpu.memory_space<smem>>
    %c1_4 = arith.constant 1 : index
    %c0_5 = arith.constant 0 : index
    %4 = memref.load %arg2[%c1_4, %c0_5] : memref<5x4xf32, #tpu.memory_space<smem>>
    %c1_6 = arith.constant 1 : index
    %c1_7 = arith.constant 1 : index
    %5 = memref.load %arg2[%c1_6, %c1_7] : memref<5x4xf32, #tpu.memory_space<smem>>
    %c1_8 = arith.constant 1 : index
    %c2_9 = arith.constant 2 : index
    %6 = memref.load %arg2[%c1_8, %c2_9] : memref<5x4xf32, #tpu.memory_space<smem>>
    %c1_10 = arith.constant 1 : index
    %c3_11 = arith.constant 3 : index
    %7 = memref.load %arg2[%c1_10, %c3_11] : memref<5x4xf32, #tpu.memory_space<smem>>
    %c2_12 = arith.constant 2 : index
    %c0_13 = arith.constant 0 : index
    %8 = memref.load %arg2[%c2_12, %c0_13] : memref<5x4xf32, #tpu.memory_space<smem>>
    %c2_14 = arith.constant 2 : index
    %c1_15 = arith.constant 1 : index
    %9 = memref.load %arg2[%c2_14, %c1_15] : memref<5x4xf32, #tpu.memory_space<smem>>
    %c2_16 = arith.constant 2 : index
    %c2_17 = arith.constant 2 : index
    %10 = memref.load %arg2[%c2_16, %c2_17] : memref<5x4xf32, #tpu.memory_space<smem>>
    %c2_18 = arith.constant 2 : index
    %c3_19 = arith.constant 3 : index
    %11 = memref.load %arg2[%c2_18, %c3_19] : memref<5x4xf32, #tpu.memory_space<smem>>
    %c3_20 = arith.constant 3 : index
    %c0_21 = arith.constant 0 : index
    %12 = memref.load %arg2[%c3_20, %c0_21] : memref<5x4xf32, #tpu.memory_space<smem>>
    %c3_22 = arith.constant 3 : index
    %c1_23 = arith.constant 1 : index
    %13 = memref.load %arg2[%c3_22, %c1_23] : memref<5x4xf32, #tpu.memory_space<smem>>
    %c3_24 = arith.constant 3 : index
    %c2_25 = arith.constant 2 : index
    %14 = memref.load %arg2[%c3_24, %c2_25] : memref<5x4xf32, #tpu.memory_space<smem>>
    %c3_26 = arith.constant 3 : index
    %c3_27 = arith.constant 3 : index
    %15 = memref.load %arg2[%c3_26, %c3_27] : memref<5x4xf32, #tpu.memory_space<smem>>
    %c4 = arith.constant 4 : index
    %c0_28 = arith.constant 0 : index
    %16 = memref.load %arg2[%c4, %c0_28] : memref<5x4xf32, #tpu.memory_space<smem>>
    %c4_29 = arith.constant 4 : index
    %c1_30 = arith.constant 1 : index
    %17 = memref.load %arg2[%c4_29, %c1_30] : memref<5x4xf32, #tpu.memory_space<smem>>
    %c4_31 = arith.constant 4 : index
    %c2_32 = arith.constant 2 : index
    %18 = memref.load %arg2[%c4_31, %c2_32] : memref<5x4xf32, #tpu.memory_space<smem>>
    %c4_33 = arith.constant 4 : index
    %c3_34 = arith.constant 3 : index
    %19 = memref.load %arg2[%c4_33, %c3_34] : memref<5x4xf32, #tpu.memory_space<smem>>
    %c0_35 = arith.constant 0 : index
    %c0_36 = arith.constant 0 : index
    %c0_37 = arith.constant 0 : index
    %20 = vector.load %arg1[%c0_35, %c0_36, %c0_37] : memref<20x32x128xf32, #tpu.memory_space<vmem>>, vector<1x32x128xf32>
    %21 = vector.shape_cast %20 : vector<1x32x128xf32> to vector<32x128xf32>
    %c1_38 = arith.constant 1 : index
    %c0_39 = arith.constant 0 : index
    %c0_40 = arith.constant 0 : index
    %22 = vector.load %arg1[%c1_38, %c0_39, %c0_40] : memref<20x32x128xf32, #tpu.memory_space<vmem>>, vector<1x32x128xf32>
    %23 = vector.shape_cast %22 : vector<1x32x128xf32> to vector<32x128xf32>
    %c2_41 = arith.constant 2 : index
    %c0_42 = arith.constant 0 : index
    %c0_43 = arith.constant 0 : index
    %24 = vector.load %arg1[%c2_41, %c0_42, %c0_43] : memref<20x32x128xf32, #tpu.memory_space<vmem>>, vector<1x32x128xf32>
    %25 = vector.shape_cast %24 : vector<1x32x128xf32> to vector<32x128xf32>
    %c3_44 = arith.constant 3 : index
    %c0_45 = arith.constant 0 : index
    %c0_46 = arith.constant 0 : index
    %26 = vector.load %arg1[%c3_44, %c0_45, %c0_46] : memref<20x32x128xf32, #tpu.memory_space<vmem>>, vector<1x32x128xf32>
    %27 = vector.shape_cast %26 : vector<1x32x128xf32> to vector<32x128xf32>
    %28 = vector.broadcast %0 : f32 to vector<32x128xf32>
    %29 = arith.mulf %21, %28 : vector<32x128xf32>
    %c0_47 = arith.constant 0 : index
    %c0_48 = arith.constant 0 : index
    %30 = memref.load %arg3[%c0_47, %c0_48] : memref<5x5xf32, #tpu.memory_space<smem>>
    %31 = vector.broadcast %30 : f32 to vector<32x128xf32>
    %32 = arith.addf %29, %31 : vector<32x128xf32>
    %33 = vector.broadcast %1 : f32 to vector<32x128xf32>
    %34 = arith.mulf %23, %33 : vector<32x128xf32>
    %35 = arith.addf %32, %34 : vector<32x128xf32>
    %36 = vector.broadcast %2 : f32 to vector<32x128xf32>
    %37 = arith.mulf %25, %36 : vector<32x128xf32>
    %38 = arith.addf %35, %37 : vector<32x128xf32>
    %39 = vector.broadcast %3 : f32 to vector<32x128xf32>
    %40 = arith.mulf %27, %39 : vector<32x128xf32>
    %41 = arith.addf %38, %40 : vector<32x128xf32>
    %cst = arith.constant 0.000000e+00 : f32
    %42 = vector.broadcast %cst : f32 to vector<32x128xf32>
    %43 = arith.maximumf %41, %42 : vector<32x128xf32>
    %44 = vector.broadcast %4 : f32 to vector<32x128xf32>
    %45 = arith.mulf %21, %44 : vector<32x128xf32>
    %c0_49 = arith.constant 0 : index
    %c1_50 = arith.constant 1 : index
    %46 = memref.load %arg3[%c0_49, %c1_50] : memref<5x5xf32, #tpu.memory_space<smem>>
    %47 = vector.broadcast %46 : f32 to vector<32x128xf32>
    %48 = arith.addf %45, %47 : vector<32x128xf32>
    %49 = vector.broadcast %5 : f32 to vector<32x128xf32>
    %50 = arith.mulf %23, %49 : vector<32x128xf32>
    %51 = arith.addf %48, %50 : vector<32x128xf32>
    %52 = vector.broadcast %6 : f32 to vector<32x128xf32>
    %53 = arith.mulf %25, %52 : vector<32x128xf32>
    %54 = arith.addf %51, %53 : vector<32x128xf32>
    %55 = vector.broadcast %7 : f32 to vector<32x128xf32>
    %56 = arith.mulf %27, %55 : vector<32x128xf32>
    %57 = arith.addf %54, %56 : vector<32x128xf32>
    %cst_51 = arith.constant 0.000000e+00 : f32
    %58 = vector.broadcast %cst_51 : f32 to vector<32x128xf32>
    %59 = arith.maximumf %57, %58 : vector<32x128xf32>
    %60 = arith.addf %43, %59 : vector<32x128xf32>
    %61 = vector.broadcast %8 : f32 to vector<32x128xf32>
    %62 = arith.mulf %21, %61 : vector<32x128xf32>
    %c0_52 = arith.constant 0 : index
    %c2_53 = arith.constant 2 : index
    %63 = memref.load %arg3[%c0_52, %c2_53] : memref<5x5xf32, #tpu.memory_space<smem>>
    %64 = vector.broadcast %63 : f32 to vector<32x128xf32>
    %65 = arith.addf %62, %64 : vector<32x128xf32>
    %66 = vector.broadcast %9 : f32 to vector<32x128xf32>
    %67 = arith.mulf %23, %66 : vector<32x128xf32>
    %68 = arith.addf %65, %67 : vector<32x128xf32>
    %69 = vector.broadcast %10 : f32 to vector<32x128xf32>
    %70 = arith.mulf %25, %69 : vector<32x128xf32>
    %71 = arith.addf %68, %70 : vector<32x128xf32>
    %72 = vector.broadcast %11 : f32 to vector<32x128xf32>
    %73 = arith.mulf %27, %72 : vector<32x128xf32>
    %74 = arith.addf %71, %73 : vector<32x128xf32>
    %cst_54 = arith.constant 0.000000e+00 : f32
    %75 = vector.broadcast %cst_54 : f32 to vector<32x128xf32>
    %76 = arith.maximumf %74, %75 : vector<32x128xf32>
    %77 = arith.addf %60, %76 : vector<32x128xf32>
    %78 = vector.broadcast %12 : f32 to vector<32x128xf32>
    %79 = arith.mulf %21, %78 : vector<32x128xf32>
    %c0_55 = arith.constant 0 : index
    %c3_56 = arith.constant 3 : index
    %80 = memref.load %arg3[%c0_55, %c3_56] : memref<5x5xf32, #tpu.memory_space<smem>>
    %81 = vector.broadcast %80 : f32 to vector<32x128xf32>
    %82 = arith.addf %79, %81 : vector<32x128xf32>
    %83 = vector.broadcast %13 : f32 to vector<32x128xf32>
    %84 = arith.mulf %23, %83 : vector<32x128xf32>
    %85 = arith.addf %82, %84 : vector<32x128xf32>
    %86 = vector.broadcast %14 : f32 to vector<32x128xf32>
    %87 = arith.mulf %25, %86 : vector<32x128xf32>
    %88 = arith.addf %85, %87 : vector<32x128xf32>
    %89 = vector.broadcast %15 : f32 to vector<32x128xf32>
    %90 = arith.mulf %27, %89 : vector<32x128xf32>
    %91 = arith.addf %88, %90 : vector<32x128xf32>
    %cst_57 = arith.constant 0.000000e+00 : f32
    %92 = vector.broadcast %cst_57 : f32 to vector<32x128xf32>
    %93 = arith.maximumf %91, %92 : vector<32x128xf32>
    %94 = arith.addf %77, %93 : vector<32x128xf32>
    %95 = vector.broadcast %16 : f32 to vector<32x128xf32>
    %96 = arith.mulf %21, %95 : vector<32x128xf32>
    %c0_58 = arith.constant 0 : index
    %c4_59 = arith.constant 4 : index
    %97 = memref.load %arg3[%c0_58, %c4_59] : memref<5x5xf32, #tpu.memory_space<smem>>
    %98 = vector.broadcast %97 : f32 to vector<32x128xf32>
    %99 = arith.addf %96, %98 : vector<32x128xf32>
    %100 = vector.broadcast %17 : f32 to vector<32x128xf32>
    %101 = arith.mulf %23, %100 : vector<32x128xf32>
    %102 = arith.addf %99, %101 : vector<32x128xf32>
    %103 = vector.broadcast %18 : f32 to vector<32x128xf32>
    %104 = arith.mulf %25, %103 : vector<32x128xf32>
    %105 = arith.addf %102, %104 : vector<32x128xf32>
    %106 = vector.broadcast %19 : f32 to vector<32x128xf32>
    %107 = arith.mulf %27, %106 : vector<32x128xf32>
    %108 = arith.addf %105, %107 : vector<32x128xf32>
    %cst_60 = arith.constant 0.000000e+00 : f32
    %109 = vector.broadcast %cst_60 : f32 to vector<32x128xf32>
    %110 = arith.maximumf %108, %109 : vector<32x128xf32>
    %111 = arith.addf %94, %110 : vector<32x128xf32>
    %c4_61 = arith.constant 4 : index
    %c0_62 = arith.constant 0 : index
    %c0_63 = arith.constant 0 : index
    %112 = vector.load %arg1[%c4_61, %c0_62, %c0_63] : memref<20x32x128xf32, #tpu.memory_space<vmem>>, vector<1x32x128xf32>
    %113 = vector.shape_cast %112 : vector<1x32x128xf32> to vector<32x128xf32>
    %c5 = arith.constant 5 : index
    %c0_64 = arith.constant 0 : index
    %c0_65 = arith.constant 0 : index
    %114 = vector.load %arg1[%c5, %c0_64, %c0_65] : memref<20x32x128xf32, #tpu.memory_space<vmem>>, vector<1x32x128xf32>
    %115 = vector.shape_cast %114 : vector<1x32x128xf32> to vector<32x128xf32>
    %c6 = arith.constant 6 : index
    %c0_66 = arith.constant 0 : index
    %c0_67 = arith.constant 0 : index
    %116 = vector.load %arg1[%c6, %c0_66, %c0_67] : memref<20x32x128xf32, #tpu.memory_space<vmem>>, vector<1x32x128xf32>
    %117 = vector.shape_cast %116 : vector<1x32x128xf32> to vector<32x128xf32>
    %c7 = arith.constant 7 : index
    %c0_68 = arith.constant 0 : index
    %c0_69 = arith.constant 0 : index
    %118 = vector.load %arg1[%c7, %c0_68, %c0_69] : memref<20x32x128xf32, #tpu.memory_space<vmem>>, vector<1x32x128xf32>
    %119 = vector.shape_cast %118 : vector<1x32x128xf32> to vector<32x128xf32>
    %120 = vector.broadcast %0 : f32 to vector<32x128xf32>
    %121 = arith.mulf %113, %120 : vector<32x128xf32>
    %c1_70 = arith.constant 1 : index
    %c0_71 = arith.constant 0 : index
    %122 = memref.load %arg3[%c1_70, %c0_71] : memref<5x5xf32, #tpu.memory_space<smem>>
    %123 = vector.broadcast %122 : f32 to vector<32x128xf32>
    %124 = arith.addf %121, %123 : vector<32x128xf32>
    %125 = vector.broadcast %1 : f32 to vector<32x128xf32>
    %126 = arith.mulf %115, %125 : vector<32x128xf32>
    %127 = arith.addf %124, %126 : vector<32x128xf32>
    %128 = vector.broadcast %2 : f32 to vector<32x128xf32>
    %129 = arith.mulf %117, %128 : vector<32x128xf32>
    %130 = arith.addf %127, %129 : vector<32x128xf32>
    %131 = vector.broadcast %3 : f32 to vector<32x128xf32>
    %132 = arith.mulf %119, %131 : vector<32x128xf32>
    %133 = arith.addf %130, %132 : vector<32x128xf32>
    %cst_72 = arith.constant 0.000000e+00 : f32
    %134 = vector.broadcast %cst_72 : f32 to vector<32x128xf32>
    %135 = arith.maximumf %133, %134 : vector<32x128xf32>
    %136 = vector.broadcast %4 : f32 to vector<32x128xf32>
    %137 = arith.mulf %113, %136 : vector<32x128xf32>
    %c1_73 = arith.constant 1 : index
    %c1_74 = arith.constant 1 : index
    %138 = memref.load %arg3[%c1_73, %c1_74] : memref<5x5xf32, #tpu.memory_space<smem>>
    %139 = vector.broadcast %138 : f32 to vector<32x128xf32>
    %140 = arith.addf %137, %139 : vector<32x128xf32>
    %141 = vector.broadcast %5 : f32 to vector<32x128xf32>
    %142 = arith.mulf %115, %141 : vector<32x128xf32>
    %143 = arith.addf %140, %142 : vector<32x128xf32>
    %144 = vector.broadcast %6 : f32 to vector<32x128xf32>
    %145 = arith.mulf %117, %144 : vector<32x128xf32>
    %146 = arith.addf %143, %145 : vector<32x128xf32>
    %147 = vector.broadcast %7 : f32 to vector<32x128xf32>
    %148 = arith.mulf %119, %147 : vector<32x128xf32>
    %149 = arith.addf %146, %148 : vector<32x128xf32>
    %cst_75 = arith.constant 0.000000e+00 : f32
    %150 = vector.broadcast %cst_75 : f32 to vector<32x128xf32>
    %151 = arith.maximumf %149, %150 : vector<32x128xf32>
    %152 = arith.addf %135, %151 : vector<32x128xf32>
    %153 = vector.broadcast %8 : f32 to vector<32x128xf32>
    %154 = arith.mulf %113, %153 : vector<32x128xf32>
    %c1_76 = arith.constant 1 : index
    %c2_77 = arith.constant 2 : index
    %155 = memref.load %arg3[%c1_76, %c2_77] : memref<5x5xf32, #tpu.memory_space<smem>>
    %156 = vector.broadcast %155 : f32 to vector<32x128xf32>
    %157 = arith.addf %154, %156 : vector<32x128xf32>
    %158 = vector.broadcast %9 : f32 to vector<32x128xf32>
    %159 = arith.mulf %115, %158 : vector<32x128xf32>
    %160 = arith.addf %157, %159 : vector<32x128xf32>
    %161 = vector.broadcast %10 : f32 to vector<32x128xf32>
    %162 = arith.mulf %117, %161 : vector<32x128xf32>
    %163 = arith.addf %160, %162 : vector<32x128xf32>
    %164 = vector.broadcast %11 : f32 to vector<32x128xf32>
    %165 = arith.mulf %119, %164 : vector<32x128xf32>
    %166 = arith.addf %163, %165 : vector<32x128xf32>
    %cst_78 = arith.constant 0.000000e+00 : f32
    %167 = vector.broadcast %cst_78 : f32 to vector<32x128xf32>
    %168 = arith.maximumf %166, %167 : vector<32x128xf32>
    %169 = arith.addf %152, %168 : vector<32x128xf32>
    %170 = vector.broadcast %12 : f32 to vector<32x128xf32>
    %171 = arith.mulf %113, %170 : vector<32x128xf32>
    %c1_79 = arith.constant 1 : index
    %c3_80 = arith.constant 3 : index
    %172 = memref.load %arg3[%c1_79, %c3_80] : memref<5x5xf32, #tpu.memory_space<smem>>
    %173 = vector.broadcast %172 : f32 to vector<32x128xf32>
    %174 = arith.addf %171, %173 : vector<32x128xf32>
    %175 = vector.broadcast %13 : f32 to vector<32x128xf32>
    %176 = arith.mulf %115, %175 : vector<32x128xf32>
    %177 = arith.addf %174, %176 : vector<32x128xf32>
    %178 = vector.broadcast %14 : f32 to vector<32x128xf32>
    %179 = arith.mulf %117, %178 : vector<32x128xf32>
    %180 = arith.addf %177, %179 : vector<32x128xf32>
    %181 = vector.broadcast %15 : f32 to vector<32x128xf32>
    %182 = arith.mulf %119, %181 : vector<32x128xf32>
    %183 = arith.addf %180, %182 : vector<32x128xf32>
    %cst_81 = arith.constant 0.000000e+00 : f32
    %184 = vector.broadcast %cst_81 : f32 to vector<32x128xf32>
    %185 = arith.maximumf %183, %184 : vector<32x128xf32>
    %186 = arith.addf %169, %185 : vector<32x128xf32>
    %187 = vector.broadcast %16 : f32 to vector<32x128xf32>
    %188 = arith.mulf %113, %187 : vector<32x128xf32>
    %c1_82 = arith.constant 1 : index
    %c4_83 = arith.constant 4 : index
    %189 = memref.load %arg3[%c1_82, %c4_83] : memref<5x5xf32, #tpu.memory_space<smem>>
    %190 = vector.broadcast %189 : f32 to vector<32x128xf32>
    %191 = arith.addf %188, %190 : vector<32x128xf32>
    %192 = vector.broadcast %17 : f32 to vector<32x128xf32>
    %193 = arith.mulf %115, %192 : vector<32x128xf32>
    %194 = arith.addf %191, %193 : vector<32x128xf32>
    %195 = vector.broadcast %18 : f32 to vector<32x128xf32>
    %196 = arith.mulf %117, %195 : vector<32x128xf32>
    %197 = arith.addf %194, %196 : vector<32x128xf32>
    %198 = vector.broadcast %19 : f32 to vector<32x128xf32>
    %199 = arith.mulf %119, %198 : vector<32x128xf32>
    %200 = arith.addf %197, %199 : vector<32x128xf32>
    %cst_84 = arith.constant 0.000000e+00 : f32
    %201 = vector.broadcast %cst_84 : f32 to vector<32x128xf32>
    %202 = arith.maximumf %200, %201 : vector<32x128xf32>
    %203 = arith.addf %186, %202 : vector<32x128xf32>
    %c8 = arith.constant 8 : index
    %c0_85 = arith.constant 0 : index
    %c0_86 = arith.constant 0 : index
    %204 = vector.load %arg1[%c8, %c0_85, %c0_86] : memref<20x32x128xf32, #tpu.memory_space<vmem>>, vector<1x32x128xf32>
    %205 = vector.shape_cast %204 : vector<1x32x128xf32> to vector<32x128xf32>
    %c9 = arith.constant 9 : index
    %c0_87 = arith.constant 0 : index
    %c0_88 = arith.constant 0 : index
    %206 = vector.load %arg1[%c9, %c0_87, %c0_88] : memref<20x32x128xf32, #tpu.memory_space<vmem>>, vector<1x32x128xf32>
    %207 = vector.shape_cast %206 : vector<1x32x128xf32> to vector<32x128xf32>
    %c10 = arith.constant 10 : index
    %c0_89 = arith.constant 0 : index
    %c0_90 = arith.constant 0 : index
    %208 = vector.load %arg1[%c10, %c0_89, %c0_90] : memref<20x32x128xf32, #tpu.memory_space<vmem>>, vector<1x32x128xf32>
    %209 = vector.shape_cast %208 : vector<1x32x128xf32> to vector<32x128xf32>
    %c11 = arith.constant 11 : index
    %c0_91 = arith.constant 0 : index
    %c0_92 = arith.constant 0 : index
    %210 = vector.load %arg1[%c11, %c0_91, %c0_92] : memref<20x32x128xf32, #tpu.memory_space<vmem>>, vector<1x32x128xf32>
    %211 = vector.shape_cast %210 : vector<1x32x128xf32> to vector<32x128xf32>
    %212 = vector.broadcast %0 : f32 to vector<32x128xf32>
    %213 = arith.mulf %205, %212 : vector<32x128xf32>
    %c2_93 = arith.constant 2 : index
    %c0_94 = arith.constant 0 : index
    %214 = memref.load %arg3[%c2_93, %c0_94] : memref<5x5xf32, #tpu.memory_space<smem>>
    %215 = vector.broadcast %214 : f32 to vector<32x128xf32>
    %216 = arith.addf %213, %215 : vector<32x128xf32>
    %217 = vector.broadcast %1 : f32 to vector<32x128xf32>
    %218 = arith.mulf %207, %217 : vector<32x128xf32>
    %219 = arith.addf %216, %218 : vector<32x128xf32>
    %220 = vector.broadcast %2 : f32 to vector<32x128xf32>
    %221 = arith.mulf %209, %220 : vector<32x128xf32>
    %222 = arith.addf %219, %221 : vector<32x128xf32>
    %223 = vector.broadcast %3 : f32 to vector<32x128xf32>
    %224 = arith.mulf %211, %223 : vector<32x128xf32>
    %225 = arith.addf %222, %224 : vector<32x128xf32>
    %cst_95 = arith.constant 0.000000e+00 : f32
    %226 = vector.broadcast %cst_95 : f32 to vector<32x128xf32>
    %227 = arith.maximumf %225, %226 : vector<32x128xf32>
    %228 = vector.broadcast %4 : f32 to vector<32x128xf32>
    %229 = arith.mulf %205, %228 : vector<32x128xf32>
    %c2_96 = arith.constant 2 : index
    %c1_97 = arith.constant 1 : index
    %230 = memref.load %arg3[%c2_96, %c1_97] : memref<5x5xf32, #tpu.memory_space<smem>>
    %231 = vector.broadcast %230 : f32 to vector<32x128xf32>
    %232 = arith.addf %229, %231 : vector<32x128xf32>
    %233 = vector.broadcast %5 : f32 to vector<32x128xf32>
    %234 = arith.mulf %207, %233 : vector<32x128xf32>
    %235 = arith.addf %232, %234 : vector<32x128xf32>
    %236 = vector.broadcast %6 : f32 to vector<32x128xf32>
    %237 = arith.mulf %209, %236 : vector<32x128xf32>
    %238 = arith.addf %235, %237 : vector<32x128xf32>
    %239 = vector.broadcast %7 : f32 to vector<32x128xf32>
    %240 = arith.mulf %211, %239 : vector<32x128xf32>
    %241 = arith.addf %238, %240 : vector<32x128xf32>
    %cst_98 = arith.constant 0.000000e+00 : f32
    %242 = vector.broadcast %cst_98 : f32 to vector<32x128xf32>
    %243 = arith.maximumf %241, %242 : vector<32x128xf32>
    %244 = arith.addf %227, %243 : vector<32x128xf32>
    %245 = vector.broadcast %8 : f32 to vector<32x128xf32>
    %246 = arith.mulf %205, %245 : vector<32x128xf32>
    %c2_99 = arith.constant 2 : index
    %c2_100 = arith.constant 2 : index
    %247 = memref.load %arg3[%c2_99, %c2_100] : memref<5x5xf32, #tpu.memory_space<smem>>
    %248 = vector.broadcast %247 : f32 to vector<32x128xf32>
    %249 = arith.addf %246, %248 : vector<32x128xf32>
    %250 = vector.broadcast %9 : f32 to vector<32x128xf32>
    %251 = arith.mulf %207, %250 : vector<32x128xf32>
    %252 = arith.addf %249, %251 : vector<32x128xf32>
    %253 = vector.broadcast %10 : f32 to vector<32x128xf32>
    %254 = arith.mulf %209, %253 : vector<32x128xf32>
    %255 = arith.addf %252, %254 : vector<32x128xf32>
    %256 = vector.broadcast %11 : f32 to vector<32x128xf32>
    %257 = arith.mulf %211, %256 : vector<32x128xf32>
    %258 = arith.addf %255, %257 : vector<32x128xf32>
    %cst_101 = arith.constant 0.000000e+00 : f32
    %259 = vector.broadcast %cst_101 : f32 to vector<32x128xf32>
    %260 = arith.maximumf %258, %259 : vector<32x128xf32>
    %261 = arith.addf %244, %260 : vector<32x128xf32>
    %262 = vector.broadcast %12 : f32 to vector<32x128xf32>
    %263 = arith.mulf %205, %262 : vector<32x128xf32>
    %c2_102 = arith.constant 2 : index
    %c3_103 = arith.constant 3 : index
    %264 = memref.load %arg3[%c2_102, %c3_103] : memref<5x5xf32, #tpu.memory_space<smem>>
    %265 = vector.broadcast %264 : f32 to vector<32x128xf32>
    %266 = arith.addf %263, %265 : vector<32x128xf32>
    %267 = vector.broadcast %13 : f32 to vector<32x128xf32>
    %268 = arith.mulf %207, %267 : vector<32x128xf32>
    %269 = arith.addf %266, %268 : vector<32x128xf32>
    %270 = vector.broadcast %14 : f32 to vector<32x128xf32>
    %271 = arith.mulf %209, %270 : vector<32x128xf32>
    %272 = arith.addf %269, %271 : vector<32x128xf32>
    %273 = vector.broadcast %15 : f32 to vector<32x128xf32>
    %274 = arith.mulf %211, %273 : vector<32x128xf32>
    %275 = arith.addf %272, %274 : vector<32x128xf32>
    %cst_104 = arith.constant 0.000000e+00 : f32
    %276 = vector.broadcast %cst_104 : f32 to vector<32x128xf32>
    %277 = arith.maximumf %275, %276 : vector<32x128xf32>
    %278 = arith.addf %261, %277 : vector<32x128xf32>
    %279 = vector.broadcast %16 : f32 to vector<32x128xf32>
    %280 = arith.mulf %205, %279 : vector<32x128xf32>
    %c2_105 = arith.constant 2 : index
    %c4_106 = arith.constant 4 : index
    %281 = memref.load %arg3[%c2_105, %c4_106] : memref<5x5xf32, #tpu.memory_space<smem>>
    %282 = vector.broadcast %281 : f32 to vector<32x128xf32>
    %283 = arith.addf %280, %282 : vector<32x128xf32>
    %284 = vector.broadcast %17 : f32 to vector<32x128xf32>
    %285 = arith.mulf %207, %284 : vector<32x128xf32>
    %286 = arith.addf %283, %285 : vector<32x128xf32>
    %287 = vector.broadcast %18 : f32 to vector<32x128xf32>
    %288 = arith.mulf %209, %287 : vector<32x128xf32>
    %289 = arith.addf %286, %288 : vector<32x128xf32>
    %290 = vector.broadcast %19 : f32 to vector<32x128xf32>
    %291 = arith.mulf %211, %290 : vector<32x128xf32>
    %292 = arith.addf %289, %291 : vector<32x128xf32>
    %cst_107 = arith.constant 0.000000e+00 : f32
    %293 = vector.broadcast %cst_107 : f32 to vector<32x128xf32>
    %294 = arith.maximumf %292, %293 : vector<32x128xf32>
    %295 = arith.addf %278, %294 : vector<32x128xf32>
    %c12 = arith.constant 12 : index
    %c0_108 = arith.constant 0 : index
    %c0_109 = arith.constant 0 : index
    %296 = vector.load %arg1[%c12, %c0_108, %c0_109] : memref<20x32x128xf32, #tpu.memory_space<vmem>>, vector<1x32x128xf32>
    %297 = vector.shape_cast %296 : vector<1x32x128xf32> to vector<32x128xf32>
    %c13 = arith.constant 13 : index
    %c0_110 = arith.constant 0 : index
    %c0_111 = arith.constant 0 : index
    %298 = vector.load %arg1[%c13, %c0_110, %c0_111] : memref<20x32x128xf32, #tpu.memory_space<vmem>>, vector<1x32x128xf32>
    %299 = vector.shape_cast %298 : vector<1x32x128xf32> to vector<32x128xf32>
    %c14 = arith.constant 14 : index
    %c0_112 = arith.constant 0 : index
    %c0_113 = arith.constant 0 : index
    %300 = vector.load %arg1[%c14, %c0_112, %c0_113] : memref<20x32x128xf32, #tpu.memory_space<vmem>>, vector<1x32x128xf32>
    %301 = vector.shape_cast %300 : vector<1x32x128xf32> to vector<32x128xf32>
    %c15 = arith.constant 15 : index
    %c0_114 = arith.constant 0 : index
    %c0_115 = arith.constant 0 : index
    %302 = vector.load %arg1[%c15, %c0_114, %c0_115] : memref<20x32x128xf32, #tpu.memory_space<vmem>>, vector<1x32x128xf32>
    %303 = vector.shape_cast %302 : vector<1x32x128xf32> to vector<32x128xf32>
    %304 = vector.broadcast %0 : f32 to vector<32x128xf32>
    %305 = arith.mulf %297, %304 : vector<32x128xf32>
    %c3_116 = arith.constant 3 : index
    %c0_117 = arith.constant 0 : index
    %306 = memref.load %arg3[%c3_116, %c0_117] : memref<5x5xf32, #tpu.memory_space<smem>>
    %307 = vector.broadcast %306 : f32 to vector<32x128xf32>
    %308 = arith.addf %305, %307 : vector<32x128xf32>
    %309 = vector.broadcast %1 : f32 to vector<32x128xf32>
    %310 = arith.mulf %299, %309 : vector<32x128xf32>
    %311 = arith.addf %308, %310 : vector<32x128xf32>
    %312 = vector.broadcast %2 : f32 to vector<32x128xf32>
    %313 = arith.mulf %301, %312 : vector<32x128xf32>
    %314 = arith.addf %311, %313 : vector<32x128xf32>
    %315 = vector.broadcast %3 : f32 to vector<32x128xf32>
    %316 = arith.mulf %303, %315 : vector<32x128xf32>
    %317 = arith.addf %314, %316 : vector<32x128xf32>
    %cst_118 = arith.constant 0.000000e+00 : f32
    %318 = vector.broadcast %cst_118 : f32 to vector<32x128xf32>
    %319 = arith.maximumf %317, %318 : vector<32x128xf32>
    %320 = vector.broadcast %4 : f32 to vector<32x128xf32>
    %321 = arith.mulf %297, %320 : vector<32x128xf32>
    %c3_119 = arith.constant 3 : index
    %c1_120 = arith.constant 1 : index
    %322 = memref.load %arg3[%c3_119, %c1_120] : memref<5x5xf32, #tpu.memory_space<smem>>
    %323 = vector.broadcast %322 : f32 to vector<32x128xf32>
    %324 = arith.addf %321, %323 : vector<32x128xf32>
    %325 = vector.broadcast %5 : f32 to vector<32x128xf32>
    %326 = arith.mulf %299, %325 : vector<32x128xf32>
    %327 = arith.addf %324, %326 : vector<32x128xf32>
    %328 = vector.broadcast %6 : f32 to vector<32x128xf32>
    %329 = arith.mulf %301, %328 : vector<32x128xf32>
    %330 = arith.addf %327, %329 : vector<32x128xf32>
    %331 = vector.broadcast %7 : f32 to vector<32x128xf32>
    %332 = arith.mulf %303, %331 : vector<32x128xf32>
    %333 = arith.addf %330, %332 : vector<32x128xf32>
    %cst_121 = arith.constant 0.000000e+00 : f32
    %334 = vector.broadcast %cst_121 : f32 to vector<32x128xf32>
    %335 = arith.maximumf %333, %334 : vector<32x128xf32>
    %336 = arith.addf %319, %335 : vector<32x128xf32>
    %337 = vector.broadcast %8 : f32 to vector<32x128xf32>
    %338 = arith.mulf %297, %337 : vector<32x128xf32>
    %c3_122 = arith.constant 3 : index
    %c2_123 = arith.constant 2 : index
    %339 = memref.load %arg3[%c3_122, %c2_123] : memref<5x5xf32, #tpu.memory_space<smem>>
    %340 = vector.broadcast %339 : f32 to vector<32x128xf32>
    %341 = arith.addf %338, %340 : vector<32x128xf32>
    %342 = vector.broadcast %9 : f32 to vector<32x128xf32>
    %343 = arith.mulf %299, %342 : vector<32x128xf32>
    %344 = arith.addf %341, %343 : vector<32x128xf32>
    %345 = vector.broadcast %10 : f32 to vector<32x128xf32>
    %346 = arith.mulf %301, %345 : vector<32x128xf32>
    %347 = arith.addf %344, %346 : vector<32x128xf32>
    %348 = vector.broadcast %11 : f32 to vector<32x128xf32>
    %349 = arith.mulf %303, %348 : vector<32x128xf32>
    %350 = arith.addf %347, %349 : vector<32x128xf32>
    %cst_124 = arith.constant 0.000000e+00 : f32
    %351 = vector.broadcast %cst_124 : f32 to vector<32x128xf32>
    %352 = arith.maximumf %350, %351 : vector<32x128xf32>
    %353 = arith.addf %336, %352 : vector<32x128xf32>
    %354 = vector.broadcast %12 : f32 to vector<32x128xf32>
    %355 = arith.mulf %297, %354 : vector<32x128xf32>
    %c3_125 = arith.constant 3 : index
    %c3_126 = arith.constant 3 : index
    %356 = memref.load %arg3[%c3_125, %c3_126] : memref<5x5xf32, #tpu.memory_space<smem>>
    %357 = vector.broadcast %356 : f32 to vector<32x128xf32>
    %358 = arith.addf %355, %357 : vector<32x128xf32>
    %359 = vector.broadcast %13 : f32 to vector<32x128xf32>
    %360 = arith.mulf %299, %359 : vector<32x128xf32>
    %361 = arith.addf %358, %360 : vector<32x128xf32>
    %362 = vector.broadcast %14 : f32 to vector<32x128xf32>
    %363 = arith.mulf %301, %362 : vector<32x128xf32>
    %364 = arith.addf %361, %363 : vector<32x128xf32>
    %365 = vector.broadcast %15 : f32 to vector<32x128xf32>
    %366 = arith.mulf %303, %365 : vector<32x128xf32>
    %367 = arith.addf %364, %366 : vector<32x128xf32>
    %cst_127 = arith.constant 0.000000e+00 : f32
    %368 = vector.broadcast %cst_127 : f32 to vector<32x128xf32>
    %369 = arith.maximumf %367, %368 : vector<32x128xf32>
    %370 = arith.addf %353, %369 : vector<32x128xf32>
    %371 = vector.broadcast %16 : f32 to vector<32x128xf32>
    %372 = arith.mulf %297, %371 : vector<32x128xf32>
    %c3_128 = arith.constant 3 : index
    %c4_129 = arith.constant 4 : index
    %373 = memref.load %arg3[%c3_128, %c4_129] : memref<5x5xf32, #tpu.memory_space<smem>>
    %374 = vector.broadcast %373 : f32 to vector<32x128xf32>
    %375 = arith.addf %372, %374 : vector<32x128xf32>
    %376 = vector.broadcast %17 : f32 to vector<32x128xf32>
    %377 = arith.mulf %299, %376 : vector<32x128xf32>
    %378 = arith.addf %375, %377 : vector<32x128xf32>
    %379 = vector.broadcast %18 : f32 to vector<32x128xf32>
    %380 = arith.mulf %301, %379 : vector<32x128xf32>
    %381 = arith.addf %378, %380 : vector<32x128xf32>
    %382 = vector.broadcast %19 : f32 to vector<32x128xf32>
    %383 = arith.mulf %303, %382 : vector<32x128xf32>
    %384 = arith.addf %381, %383 : vector<32x128xf32>
    %cst_130 = arith.constant 0.000000e+00 : f32
    %385 = vector.broadcast %cst_130 : f32 to vector<32x128xf32>
    %386 = arith.maximumf %384, %385 : vector<32x128xf32>
    %387 = arith.addf %370, %386 : vector<32x128xf32>
    %c16 = arith.constant 16 : index
    %c0_131 = arith.constant 0 : index
    %c0_132 = arith.constant 0 : index
    %388 = vector.load %arg1[%c16, %c0_131, %c0_132] : memref<20x32x128xf32, #tpu.memory_space<vmem>>, vector<1x32x128xf32>
    %389 = vector.shape_cast %388 : vector<1x32x128xf32> to vector<32x128xf32>
    %c17 = arith.constant 17 : index
    %c0_133 = arith.constant 0 : index
    %c0_134 = arith.constant 0 : index
    %390 = vector.load %arg1[%c17, %c0_133, %c0_134] : memref<20x32x128xf32, #tpu.memory_space<vmem>>, vector<1x32x128xf32>
    %391 = vector.shape_cast %390 : vector<1x32x128xf32> to vector<32x128xf32>
    %c18 = arith.constant 18 : index
    %c0_135 = arith.constant 0 : index
    %c0_136 = arith.constant 0 : index
    %392 = vector.load %arg1[%c18, %c0_135, %c0_136] : memref<20x32x128xf32, #tpu.memory_space<vmem>>, vector<1x32x128xf32>
    %393 = vector.shape_cast %392 : vector<1x32x128xf32> to vector<32x128xf32>
    %c19 = arith.constant 19 : index
    %c0_137 = arith.constant 0 : index
    %c0_138 = arith.constant 0 : index
    %394 = vector.load %arg1[%c19, %c0_137, %c0_138] : memref<20x32x128xf32, #tpu.memory_space<vmem>>, vector<1x32x128xf32>
    %395 = vector.shape_cast %394 : vector<1x32x128xf32> to vector<32x128xf32>
    %396 = vector.broadcast %0 : f32 to vector<32x128xf32>
    %397 = arith.mulf %389, %396 : vector<32x128xf32>
    %c4_139 = arith.constant 4 : index
    %c0_140 = arith.constant 0 : index
    %398 = memref.load %arg3[%c4_139, %c0_140] : memref<5x5xf32, #tpu.memory_space<smem>>
    %399 = vector.broadcast %398 : f32 to vector<32x128xf32>
    %400 = arith.addf %397, %399 : vector<32x128xf32>
    %401 = vector.broadcast %1 : f32 to vector<32x128xf32>
    %402 = arith.mulf %391, %401 : vector<32x128xf32>
    %403 = arith.addf %400, %402 : vector<32x128xf32>
    %404 = vector.broadcast %2 : f32 to vector<32x128xf32>
    %405 = arith.mulf %393, %404 : vector<32x128xf32>
    %406 = arith.addf %403, %405 : vector<32x128xf32>
    %407 = vector.broadcast %3 : f32 to vector<32x128xf32>
    %408 = arith.mulf %395, %407 : vector<32x128xf32>
    %409 = arith.addf %406, %408 : vector<32x128xf32>
    %cst_141 = arith.constant 0.000000e+00 : f32
    %410 = vector.broadcast %cst_141 : f32 to vector<32x128xf32>
    %411 = arith.maximumf %409, %410 : vector<32x128xf32>
    %412 = vector.broadcast %4 : f32 to vector<32x128xf32>
    %413 = arith.mulf %389, %412 : vector<32x128xf32>
    %c4_142 = arith.constant 4 : index
    %c1_143 = arith.constant 1 : index
    %414 = memref.load %arg3[%c4_142, %c1_143] : memref<5x5xf32, #tpu.memory_space<smem>>
    %415 = vector.broadcast %414 : f32 to vector<32x128xf32>
    %416 = arith.addf %413, %415 : vector<32x128xf32>
    %417 = vector.broadcast %5 : f32 to vector<32x128xf32>
    %418 = arith.mulf %391, %417 : vector<32x128xf32>
    %419 = arith.addf %416, %418 : vector<32x128xf32>
    %420 = vector.broadcast %6 : f32 to vector<32x128xf32>
    %421 = arith.mulf %393, %420 : vector<32x128xf32>
    %422 = arith.addf %419, %421 : vector<32x128xf32>
    %423 = vector.broadcast %7 : f32 to vector<32x128xf32>
    %424 = arith.mulf %395, %423 : vector<32x128xf32>
    %425 = arith.addf %422, %424 : vector<32x128xf32>
    %cst_144 = arith.constant 0.000000e+00 : f32
    %426 = vector.broadcast %cst_144 : f32 to vector<32x128xf32>
    %427 = arith.maximumf %425, %426 : vector<32x128xf32>
    %428 = arith.addf %411, %427 : vector<32x128xf32>
    %429 = vector.broadcast %8 : f32 to vector<32x128xf32>
    %430 = arith.mulf %389, %429 : vector<32x128xf32>
    %c4_145 = arith.constant 4 : index
    %c2_146 = arith.constant 2 : index
    %431 = memref.load %arg3[%c4_145, %c2_146] : memref<5x5xf32, #tpu.memory_space<smem>>
    %432 = vector.broadcast %431 : f32 to vector<32x128xf32>
    %433 = arith.addf %430, %432 : vector<32x128xf32>
    %434 = vector.broadcast %9 : f32 to vector<32x128xf32>
    %435 = arith.mulf %391, %434 : vector<32x128xf32>
    %436 = arith.addf %433, %435 : vector<32x128xf32>
    %437 = vector.broadcast %10 : f32 to vector<32x128xf32>
    %438 = arith.mulf %393, %437 : vector<32x128xf32>
    %439 = arith.addf %436, %438 : vector<32x128xf32>
    %440 = vector.broadcast %11 : f32 to vector<32x128xf32>
    %441 = arith.mulf %395, %440 : vector<32x128xf32>
    %442 = arith.addf %439, %441 : vector<32x128xf32>
    %cst_147 = arith.constant 0.000000e+00 : f32
    %443 = vector.broadcast %cst_147 : f32 to vector<32x128xf32>
    %444 = arith.maximumf %442, %443 : vector<32x128xf32>
    %445 = arith.addf %428, %444 : vector<32x128xf32>
    %446 = vector.broadcast %12 : f32 to vector<32x128xf32>
    %447 = arith.mulf %389, %446 : vector<32x128xf32>
    %c4_148 = arith.constant 4 : index
    %c3_149 = arith.constant 3 : index
    %448 = memref.load %arg3[%c4_148, %c3_149] : memref<5x5xf32, #tpu.memory_space<smem>>
    %449 = vector.broadcast %448 : f32 to vector<32x128xf32>
    %450 = arith.addf %447, %449 : vector<32x128xf32>
    %451 = vector.broadcast %13 : f32 to vector<32x128xf32>
    %452 = arith.mulf %391, %451 : vector<32x128xf32>
    %453 = arith.addf %450, %452 : vector<32x128xf32>
    %454 = vector.broadcast %14 : f32 to vector<32x128xf32>
    %455 = arith.mulf %393, %454 : vector<32x128xf32>
    %456 = arith.addf %453, %455 : vector<32x128xf32>
    %457 = vector.broadcast %15 : f32 to vector<32x128xf32>
    %458 = arith.mulf %395, %457 : vector<32x128xf32>
    %459 = arith.addf %456, %458 : vector<32x128xf32>
    %cst_150 = arith.constant 0.000000e+00 : f32
    %460 = vector.broadcast %cst_150 : f32 to vector<32x128xf32>
    %461 = arith.maximumf %459, %460 : vector<32x128xf32>
    %462 = arith.addf %445, %461 : vector<32x128xf32>
    %463 = vector.broadcast %16 : f32 to vector<32x128xf32>
    %464 = arith.mulf %389, %463 : vector<32x128xf32>
    %c4_151 = arith.constant 4 : index
    %c4_152 = arith.constant 4 : index
    %465 = memref.load %arg3[%c4_151, %c4_152] : memref<5x5xf32, #tpu.memory_space<smem>>
    %466 = vector.broadcast %465 : f32 to vector<32x128xf32>
    %467 = arith.addf %464, %466 : vector<32x128xf32>
    %468 = vector.broadcast %17 : f32 to vector<32x128xf32>
    %469 = arith.mulf %391, %468 : vector<32x128xf32>
    %470 = arith.addf %467, %469 : vector<32x128xf32>
    %471 = vector.broadcast %18 : f32 to vector<32x128xf32>
    %472 = arith.mulf %393, %471 : vector<32x128xf32>
    %473 = arith.addf %470, %472 : vector<32x128xf32>
    %474 = vector.broadcast %19 : f32 to vector<32x128xf32>
    %475 = arith.mulf %395, %474 : vector<32x128xf32>
    %476 = arith.addf %473, %475 : vector<32x128xf32>
    %cst_153 = arith.constant 0.000000e+00 : f32
    %477 = vector.broadcast %cst_153 : f32 to vector<32x128xf32>
    %478 = arith.maximumf %476, %477 : vector<32x128xf32>
    %479 = arith.addf %462, %478 : vector<32x128xf32>
    %480 = arith.cmpf ogt, %203, %111 : vector<32x128xf32>
    %481 = arith.select %480, %203, %111 : vector<32x128xi1>, vector<32x128xf32>
    %c1_i32 = arith.constant 1 : i32
    %c0_i32 = arith.constant 0 : i32
    %482 = vector.broadcast %c1_i32 : i32 to vector<32x128xi32>
    %483 = vector.broadcast %c0_i32 : i32 to vector<32x128xi32>
    %484 = arith.select %480, %482, %483 : vector<32x128xi1>, vector<32x128xi32>
    %485 = arith.select %480, %111, %203 : vector<32x128xi1>, vector<32x128xf32>
    %c0_i32_154 = arith.constant 0 : i32
    %c1_i32_155 = arith.constant 1 : i32
    %486 = vector.broadcast %c0_i32_154 : i32 to vector<32x128xi32>
    %487 = vector.broadcast %c1_i32_155 : i32 to vector<32x128xi32>
    %488 = arith.select %480, %486, %487 : vector<32x128xi1>, vector<32x128xi32>
    %489 = arith.cmpf ogt, %295, %485 : vector<32x128xf32>
    %490 = arith.select %489, %295, %485 : vector<32x128xi1>, vector<32x128xf32>
    %c2_i32 = arith.constant 2 : i32
    %491 = vector.broadcast %c2_i32 : i32 to vector<32x128xi32>
    %492 = arith.select %489, %491, %488 : vector<32x128xi1>, vector<32x128xi32>
    %493 = arith.select %489, %485, %295 : vector<32x128xi1>, vector<32x128xf32>
    %c2_i32_156 = arith.constant 2 : i32
    %494 = vector.broadcast %c2_i32_156 : i32 to vector<32x128xi32>
    %495 = arith.select %489, %488, %494 : vector<32x128xi1>, vector<32x128xi32>
    %496 = arith.cmpf ogt, %490, %481 : vector<32x128xf32>
    %497 = arith.select %496, %490, %481 : vector<32x128xi1>, vector<32x128xf32>
    %498 = arith.select %496, %492, %484 : vector<32x128xi1>, vector<32x128xi32>
    %499 = arith.select %496, %481, %490 : vector<32x128xi1>, vector<32x128xf32>
    %500 = arith.select %496, %484, %492 : vector<32x128xi1>, vector<32x128xi32>
    %501 = arith.cmpf ogt, %387, %497 : vector<32x128xf32>
    %502 = arith.cmpf ogt, %387, %499 : vector<32x128xf32>
    %503 = arith.cmpf ogt, %387, %493 : vector<32x128xf32>
    %504 = arith.select %501, %387, %497 : vector<32x128xi1>, vector<32x128xf32>
    %c3_i32 = arith.constant 3 : i32
    %505 = vector.broadcast %c3_i32 : i32 to vector<32x128xi32>
    %506 = arith.select %501, %505, %498 : vector<32x128xi1>, vector<32x128xi32>
    %507 = arith.select %502, %387, %499 : vector<32x128xi1>, vector<32x128xf32>
    %508 = arith.select %501, %497, %507 : vector<32x128xi1>, vector<32x128xf32>
    %c3_i32_157 = arith.constant 3 : i32
    %509 = vector.broadcast %c3_i32_157 : i32 to vector<32x128xi32>
    %510 = arith.select %502, %509, %500 : vector<32x128xi1>, vector<32x128xi32>
    %511 = arith.select %501, %498, %510 : vector<32x128xi1>, vector<32x128xi32>
    %512 = arith.select %503, %387, %493 : vector<32x128xi1>, vector<32x128xf32>
    %513 = arith.select %502, %499, %512 : vector<32x128xi1>, vector<32x128xf32>
    %c3_i32_158 = arith.constant 3 : i32
    %514 = vector.broadcast %c3_i32_158 : i32 to vector<32x128xi32>
    %515 = arith.select %503, %514, %495 : vector<32x128xi1>, vector<32x128xi32>
    %516 = arith.select %502, %500, %515 : vector<32x128xi1>, vector<32x128xi32>
    %517 = arith.cmpf ogt, %479, %504 : vector<32x128xf32>
    %518 = arith.cmpf ogt, %479, %508 : vector<32x128xf32>
    %519 = arith.cmpf ogt, %479, %513 : vector<32x128xf32>
    %520 = arith.select %517, %479, %504 : vector<32x128xi1>, vector<32x128xf32>
    %c4_i32 = arith.constant 4 : i32
    %521 = vector.broadcast %c4_i32 : i32 to vector<32x128xi32>
    %522 = arith.select %517, %521, %506 : vector<32x128xi1>, vector<32x128xi32>
    %523 = arith.select %518, %479, %508 : vector<32x128xi1>, vector<32x128xf32>
    %524 = arith.select %517, %504, %523 : vector<32x128xi1>, vector<32x128xf32>
    %c4_i32_159 = arith.constant 4 : i32
    %525 = vector.broadcast %c4_i32_159 : i32 to vector<32x128xi32>
    %526 = arith.select %518, %525, %511 : vector<32x128xi1>, vector<32x128xi32>
    %527 = arith.select %517, %506, %526 : vector<32x128xi1>, vector<32x128xi32>
    %528 = arith.select %519, %479, %513 : vector<32x128xi1>, vector<32x128xf32>
    %529 = arith.select %518, %508, %528 : vector<32x128xi1>, vector<32x128xf32>
    %c4_i32_160 = arith.constant 4 : i32
    %530 = vector.broadcast %c4_i32_160 : i32 to vector<32x128xi32>
    %531 = arith.select %519, %530, %516 : vector<32x128xi1>, vector<32x128xi32>
    %532 = arith.select %518, %511, %531 : vector<32x128xi1>, vector<32x128xi32>
    %c0_161 = arith.constant 0 : index
    %c0_162 = arith.constant 0 : index
    %c0_163 = arith.constant 0 : index
    %533 = vector.load %arg4[%c0_161, %c0_162, %c0_163] : memref<3x32x128xf32, #tpu.memory_space<vmem>>, vector<1x32x128xf32>
    %534 = vector.shape_cast %533 : vector<1x32x128xf32> to vector<32x128xf32>
    %535 = vector.shape_cast %520 : vector<32x128xf32> to vector<1x32x128xf32>
    tpu.vector_store %arg4[%c0_161, %c0_162, %c0_163], %535 {strides = array<i32>} : memref<3x32x128xf32, #tpu.memory_space<vmem>>, vector<1x32x128xf32>,
    %c1_164 = arith.constant 1 : index
    %c0_165 = arith.constant 0 : index
    %c0_166 = arith.constant 0 : index
    %536 = vector.load %arg4[%c1_164, %c0_165, %c0_166] : memref<3x32x128xf32, #tpu.memory_space<vmem>>, vector<1x32x128xf32>
    %537 = vector.shape_cast %536 : vector<1x32x128xf32> to vector<32x128xf32>
    %538 = vector.shape_cast %524 : vector<32x128xf32> to vector<1x32x128xf32>
    tpu.vector_store %arg4[%c1_164, %c0_165, %c0_166], %538 {strides = array<i32>} : memref<3x32x128xf32, #tpu.memory_space<vmem>>, vector<1x32x128xf32>,
    %c2_167 = arith.constant 2 : index
    %c0_168 = arith.constant 0 : index
    %c0_169 = arith.constant 0 : index
    %539 = vector.load %arg4[%c2_167, %c0_168, %c0_169] : memref<3x32x128xf32, #tpu.memory_space<vmem>>, vector<1x32x128xf32>
    %540 = vector.shape_cast %539 : vector<1x32x128xf32> to vector<32x128xf32>
    %541 = vector.shape_cast %529 : vector<32x128xf32> to vector<1x32x128xf32>
    tpu.vector_store %arg4[%c2_167, %c0_168, %c0_169], %541 {strides = array<i32>} : memref<3x32x128xf32, #tpu.memory_space<vmem>>, vector<1x32x128xf32>,
    %542 = arith.trunci %522 : vector<32x128xi32> to vector<32x128xi8>
    %c0_170 = arith.constant 0 : index
    %c0_171 = arith.constant 0 : index
    %c0_172 = arith.constant 0 : index
    %543 = vector.load %arg5[%c0_170, %c0_171, %c0_172] : memref<3x32x128xi8, #tpu.memory_space<vmem>>, vector<1x32x128xi8>
    %544 = vector.shape_cast %543 : vector<1x32x128xi8> to vector<32x128xi8>
    %545 = vector.shape_cast %542 : vector<32x128xi8> to vector<1x32x128xi8>
    tpu.vector_store %arg5[%c0_170, %c0_171, %c0_172], %545 {strides = array<i32>} : memref<3x32x128xi8, #tpu.memory_space<vmem>>, vector<1x32x128xi8>,
    %546 = arith.trunci %527 : vector<32x128xi32> to vector<32x128xi8>
    %c1_173 = arith.constant 1 : index
    %c0_174 = arith.constant 0 : index
    %c0_175 = arith.constant 0 : index
    %547 = vector.load %arg5[%c1_173, %c0_174, %c0_175] : memref<3x32x128xi8, #tpu.memory_space<vmem>>, vector<1x32x128xi8>
    %548 = vector.shape_cast %547 : vector<1x32x128xi8> to vector<32x128xi8>
    %549 = vector.shape_cast %546 : vector<32x128xi8> to vector<1x32x128xi8>
    tpu.vector_store %arg5[%c1_173, %c0_174, %c0_175], %549 {strides = array<i32>} : memref<3x32x128xi8, #tpu.memory_space<vmem>>, vector<1x32x128xi8>,
    %550 = arith.trunci %532 : vector<32x128xi32> to vector<32x128xi8>
    %c2_176 = arith.constant 2 : index
    %c0_177 = arith.constant 0 : index
    %c0_178 = arith.constant 0 : index
    %551 = vector.load %arg5[%c2_176, %c0_177, %c0_178] : memref<3x32x128xi8, #tpu.memory_space<vmem>>, vector<1x32x128xi8>
    %552 = vector.shape_cast %551 : vector<1x32x128xi8> to vector<32x128xi8>
    %553 = vector.shape_cast %550 : vector<32x128xi8> to vector<1x32x128xi8>
    tpu.vector_store %arg5[%c2_176, %c0_177, %c0_178], %553 {strides = array<i32>} : memref<3x32x128xi8, #tpu.memory_space<vmem>>, vector<1x32x128xi8>,
    return
  }
  func.func @transform_0(%arg0: i32) -> (i32, i32, i32) {
    %c0_i32 = arith.constant 0 : i32
    %c0_i32_0 = arith.constant 0 : i32
    %c0_i32_1 = arith.constant 0 : i32
    return %c0_i32, %arg0, %c0_i32_0 : i32, i32, i32
  }
  func.func @transform_1(%arg0: i32) -> (i32, i32) {
    %c0_i32 = arith.constant 0 : i32
    %c0_i32_0 = arith.constant 0 : i32
    %c0_i32_1 = arith.constant 0 : i32
    return %c0_i32, %c0_i32_0 : i32, i32
  }
  func.func @transform_2(%arg0: i32) -> (i32, i32) {
    %c0_i32 = arith.constant 0 : i32
    %c0_i32_0 = arith.constant 0 : i32
    %c0_i32_1 = arith.constant 0 : i32
    return %c0_i32, %c0_i32_0 : i32, i32
  }
  func.func @transform_3(%arg0: i32) -> (i32, i32, i32) {
    %c0_i32 = arith.constant 0 : i32
    %c0_i32_0 = arith.constant 0 : i32
    %c0_i32_1 = arith.constant 0 : i32
    return %c0_i32, %arg0, %c0_i32_0 : i32, i32, i32
  }
  func.func @transform_4(%arg0: i32) -> (i32, i32, i32) {
    %c0_i32 = arith.constant 0 : i32
    %c0_i32_0 = arith.constant 0 : i32
    %c0_i32_1 = arith.constant 0 : i32
    return %c0_i32, %arg0, %c0_i32_0 : i32, i32, i32
  }
}

</mosaic_0001>

<llo_original>
// kernel: mymodule_forward.1
$region0: #{mymodule_forward.1}
  #allocation0 [shape = 'u32[]', space=smem, size = 0x4, offset = 0x4, fixed_abs, tag = 'smem constant byte address 0x4 - core index']
  #allocation1 [shape = 'u32[72,128]{1,0:T(1,128)}', space=vmem, size = 0x9000, scoped, tag = 'internal scratch']
  %s0 = inlined_call_operand.vmem [shape: f32[20,32,128], index: 0, kind: input, shape index: {}]
  %s1 = inlined_call_operand.vmem [shape: f32[5,4], index: 1, kind: input, shape index: {}]
  %s2 = inlined_call_operand.vmem [shape: f32[5,5], index: 2, kind: input, shape index: {}]
  %s3 = inlined_call_operand.vmem [shape: f32[3,32,128], index: 3, kind: output, shape index: {0}]
  %s4 = inlined_call_operand.vmem [shape: s8[3,32,128], index: 4, kind: output, shape index: {1}]
  %5 = xla_tuple %s3, %s4
  %s6 = sld [smem:[#allocation0]]
  $region38: #{mymodule_forward.1} parent=0
    _
  %s8 = ssub.s32 1, %s6
  %s9 = scalar_select 0, %s8, %s6
  $region1: #{mymodule_forward.1} parent=0
    #allocation2 [shape = 'u8[4096]{0}', space=smem, size = 0x1000, scoped, tag = 'input window, operand 1, single buffered']
    #allocation3 [shape = 's32[1]{0}', space=sflag, size = 0x4, scoped, tag = 'scoped memory for mymodule_forward.1']
    #allocation4 [shape = 'u8[4096]{0}', space=smem, size = 0x1000, scoped, tag = 'input window, operand 2, single buffered']
    #allocation5 [shape = 's32[1]{0}', space=sflag, size = 0x4, scoped, tag = 'scoped memory for mymodule_forward.1']
    %10 = vsyncpa [#allocation3], 0
    %11 = vsyncpa [#allocation5], 0
    // Predicated region
    $region2: #{mymodule_forward.1} parent=1 // pred_check
      _
    $region3: #{mymodule_forward.1} parent=1 // pred_check_branch
      %13 = sbr.rel (0) target = $region5
    $region4: #{mymodule_forward.1} parent=1 // pred_region
      _
    $region5: #{mymodule_forward.1} parent=1 // pred_fallthru
      _
    // Predicated region
    $region6: #{mymodule_forward.1} parent=1 // pred_check
      _
    $region7: #{mymodule_forward.1} parent=1 // pred_check_branch
      %15 = sbr.rel (0) target = $region9
    $region8: #{mymodule_forward.1} parent=1 // pred_region
      %17 = vsyncadd [#allocation3], 0
      %s19 = sshll.u32 %s1, 4
      %s20 = int_to_ptr.vmem [resolvable:$true] %s19
      %22 = dma.vmem_to_smem %s20, 128, [#allocation2], [#allocation3]
    $region9: #{mymodule_forward.1} parent=1 // pred_fallthru
      _
    // Predicated region
    $region10: #{mymodule_forward.1} parent=1 // pred_check
      _
    $region11: #{mymodule_forward.1} parent=1 // pred_check_branch
      %24 = sbr.rel (0) target = $region13
    $region12: #{mymodule_forward.1} parent=1 // pred_region
      %26 = vsyncadd [#allocation5], 0
      %s28 = sshll.u32 %s2, 4
      %s29 = int_to_ptr.vmem [resolvable:$true] %s28
      %31 = dma.vmem_to_smem %s29, 128, [#allocation4], [#allocation5]
    $region13: #{mymodule_forward.1} parent=1 // pred_fallthru
      _
    // Predicated region
    $region14: #{mymodule_forward.1} parent=1 // pred_check
      _
    $region15: #{mymodule_forward.1} parent=1 // pred_check_branch
      %33 = sbr.rel (0) target = $region17
    $region16: #{mymodule_forward.1} parent=1 // pred_region
      %35 = dma.done [#allocation3], 128
    $region17: #{mymodule_forward.1} parent=1 // pred_fallthru
      _
    // Predicated region
    $region18: #{mymodule_forward.1} parent=1 // pred_check
      _
    $region19: #{mymodule_forward.1} parent=1 // pred_check_branch
      %37 = sbr.rel (0) target = $region21
    $region20: #{mymodule_forward.1} parent=1 // pred_region
      %39 = dma.done [#allocation5], 128
    $region21: #{mymodule_forward.1} parent=1 // pred_fallthru
      _
    %40 = sfence
    %s41 = sld [smem:[#allocation2]]
    %s42 = sld [smem:[#allocation2 + $0x1]]
    %s43 = sld [smem:[#allocation2 + $0x2]]
    %s44 = sld [smem:[#allocation2 + $0x3]]
    %s45 = sld [smem:[#allocation2 + $0x80]]
    %s46 = sld [smem:[#allocation2 + $0x81]]
    %s47 = sld [smem:[#allocation2 + $0x82]]
    %s48 = sld [smem:[#allocation2 + $0x83]]
    %s49 = sld [smem:[#allocation2 + $0x100]]
    %s50 = sld [smem:[#allocation2 + $0x101]]
    %s51 = sld [smem:[#allocation2 + $0x102]]
    %s52 = sld [smem:[#allocation2 + $0x103]]
    %s53 = sld [smem:[#allocation2 + $0x180]]
    %s54 = sld [smem:[#allocation2 + $0x181]]
    %s55 = sld [smem:[#allocation2 + $0x182]]
    %s56 = sld [smem:[#allocation2 + $0x183]]
    %s57 = sld [smem:[#allocation2 + $0x200]]
    %s58 = sld [smem:[#allocation2 + $0x201]]
    %s59 = sld [smem:[#allocation2 + $0x202]]
    %s60 = sld [smem:[#allocation2 + $0x203]]
    %v61 = vld [vmem:[%s0] sm:$0xff]
    %v62 = vld [vmem:[%s0 + $0x8] sm:$0xff]
    %v63 = vld [vmem:[%s0 + $0x10] sm:$0xff]
    %v64 = vld [vmem:[%s0 + $0x18] sm:$0xff]
    %s65 = scalar_lea.vmem %s0, 32
    %v66 = vld [vmem:[%s65] sm:$0xff]
    %v67 = vld [vmem:[%s65 + $0x8] sm:$0xff]
    %v68 = vld [vmem:[%s65 + $0x10] sm:$0xff]
    %v69 = vld [vmem:[%s65 + $0x18] sm:$0xff]
    %s70 = scalar_lea.vmem %s0, 64
    %v71 = vld [vmem:[%s70] sm:$0xff]
    %v72 = vld [vmem:[%s70 + $0x8] sm:$0xff]
    %v73 = vld [vmem:[%s70 + $0x10] sm:$0xff]
    %v74 = vld [vmem:[%s70 + $0x18] sm:$0xff]
    %s75 = scalar_lea.vmem %s0, 96
    %v76 = vld [vmem:[%s75] sm:$0xff]
    %v77 = vld [vmem:[%s75 + $0x8] sm:$0xff]
    %v78 = vld [vmem:[%s75 + $0x10] sm:$0xff]
    %v79 = vld [vmem:[%s75 + $0x18] sm:$0xff]
    %v80 = vstv %s41
    %v81 = vmul.f32 %v61, %v80
    %v82 = vmul.f32 %v62, %v80
    %v83 = vmul.f32 %v63, %v80
    %v84 = vmul.f32 %v64, %v80
    %s85 = sld [smem:[#allocation4]]
    %v86 = vstv %s85
    %v87 = vadd.f32 %v81, %v86
    %v88 = vadd.f32 %v82, %v86
    %v89 = vadd.f32 %v83, %v86
    %v90 = vadd.f32 %v84, %v86
    %v91 = vstv %s42
    %v92 = vmul.f32 %v66, %v91
    %v93 = vmul.f32 %v67, %v91
    %v94 = vmul.f32 %v68, %v91
    %v95 = vmul.f32 %v69, %v91
    %v96 = vadd.f32 %v87, %v92
    %v97 = vadd.f32 %v88, %v93
    %v98 = vadd.f32 %v89, %v94
    %v99 = vadd.f32 %v90, %v95
    %v100 = vstv %s43
    %v101 = vmul.f32 %v71, %v100
    %v102 = vmul.f32 %v72, %v100
    %v103 = vmul.f32 %v73, %v100
    %v104 = vmul.f32 %v74, %v100
    %v105 = vadd.f32 %v96, %v101
    %v106 = vadd.f32 %v97, %v102
    %v107 = vadd.f32 %v98, %v103
    %v108 = vadd.f32 %v99, %v104
    %v109 = vstv %s44
    %v110 = vmul.f32 %v76, %v109
    %v111 = vmul.f32 %v77, %v109
    %v112 = vmul.f32 %v78, %v109
    %v113 = vmul.f32 %v79, %v109
    %v114 = vadd.f32 %v105, %v110
    %v115 = vadd.f32 %v106, %v111
    %v116 = vadd.f32 %v107, %v112
    %v117 = vadd.f32 %v108, %v113
    %v118 = vmax.f32 %v114, 0.0
    %v119 = vmax.f32 %v115, 0.0
    %v120 = vmax.f32 %v116, 0.0
    %v121 = vmax.f32 %v117, 0.0
    %v122 = vstv %s45
    %v123 = vmul.f32 %v61, %v122
    %v124 = vmul.f32 %v62, %v122
    %v125 = vmul.f32 %v63, %v122
    %v126 = vmul.f32 %v64, %v122
    %s127 = sld [smem:[#allocation4 + $0x1]]
    %v128 = vstv %s127
    %v129 = vadd.f32 %v123, %v128
    %v130 = vadd.f32 %v124, %v128
    %v131 = vadd.f32 %v125, %v128
    %v132 = vadd.f32 %v126, %v128
    %v133 = vstv %s46
    %v134 = vmul.f32 %v66, %v133
    %v135 = vmul.f32 %v67, %v133
    %v136 = vmul.f32 %v68, %v133
    %v137 = vmul.f32 %v69, %v133
    %v138 = vadd.f32 %v129, %v134
    %v139 = vadd.f32 %v130, %v135
    %v140 = vadd.f32 %v131, %v136
    %v141 = vadd.f32 %v132, %v137
    %v142 = vstv %s47
    %v143 = vmul.f32 %v71, %v142
    %v144 = vmul.f32 %v72, %v142
    %v145 = vmul.f32 %v73, %v142
    %v146 = vmul.f32 %v74, %v142
    %v147 = vadd.f32 %v138, %v143
    %v148 = vadd.f32 %v139, %v144
    %v149 = vadd.f32 %v140, %v145
    %v150 = vadd.f32 %v141, %v146
    %v151 = vstv %s48
    %v152 = vmul.f32 %v76, %v151
    %v153 = vmul.f32 %v77, %v151
    %v154 = vmul.f32 %v78, %v151
    %v155 = vmul.f32 %v79, %v151
    %v156 = vadd.f32 %v147, %v152
    %v157 = vadd.f32 %v148, %v153
    %v158 = vadd.f32 %v149, %v154
    %v159 = vadd.f32 %v150, %v155
    %v160 = vmax.f32 %v156, 0.0
    %v161 = vmax.f32 %v157, 0.0
    %v162 = vmax.f32 %v158, 0.0
    %v163 = vmax.f32 %v159, 0.0
    %v164 = vadd.f32 %v118, %v160
    %v165 = vadd.f32 %v119, %v161
    %v166 = vadd.f32 %v120, %v162
    %v167 = vadd.f32 %v121, %v163
    %v168 = vstv %s49
    %v169 = vmul.f32 %v61, %v168
    %v170 = vmul.f32 %v62, %v168
    %v171 = vmul.f32 %v63, %v168
    %v172 = vmul.f32 %v64, %v168
    %s173 = sld [smem:[#allocation4 + $0x2]]
    %v174 = vstv %s173
    %v175 = vadd.f32 %v169, %v174
    %v176 = vadd.f32 %v170, %v174
    %v177 = vadd.f32 %v171, %v174
    %v178 = vadd.f32 %v172, %v174
    %v179 = vstv %s50
    %v180 = vmul.f32 %v66, %v179
    %v181 = vmul.f32 %v67, %v179
    %v182 = vmul.f32 %v68, %v179
    %v183 = vmul.f32 %v69, %v179
    %v184 = vadd.f32 %v175, %v180
    %v185 = vadd.f32 %v176, %v181
    %v186 = vadd.f32 %v177, %v182
    %v187 = vadd.f32 %v178, %v183
    %v188 = vstv %s51
    %v189 = vmul.f32 %v71, %v188
    %v190 = vmul.f32 %v72, %v188
    %v191 = vmul.f32 %v73, %v188
    %v192 = vmul.f32 %v74, %v188
    %v193 = vadd.f32 %v184, %v189
    %v194 = vadd.f32 %v185, %v190
    %v195 = vadd.f32 %v186, %v191
    %v196 = vadd.f32 %v187, %v192
    %v197 = vstv %s52
    %v198 = vmul.f32 %v76, %v197
    %v199 = vmul.f32 %v77, %v197
    %v200 = vmul.f32 %v78, %v197
    %v201 = vmul.f32 %v79, %v197
    %v202 = vadd.f32 %v193, %v198
    %v203 = vadd.f32 %v194, %v199
    %v204 = vadd.f32 %v195, %v200
    %v205 = vadd.f32 %v196, %v201
    %v206 = vmax.f32 %v202, 0.0
    %v207 = vmax.f32 %v203, 0.0
    %v208 = vmax.f32 %v204, 0.0
    %v209 = vmax.f32 %v205, 0.0
    %v210 = vadd.f32 %v164, %v206
    %v211 = vadd.f32 %v165, %v207
    %v212 = vadd.f32 %v166, %v208
    %v213 = vadd.f32 %v167, %v209
    %v214 = vstv %s53
    %v215 = vmul.f32 %v61, %v214
    %v216 = vmul.f32 %v62, %v214
    %v217 = vmul.f32 %v63, %v214
    %v218 = vmul.f32 %v64, %v214
    %s219 = sld [smem:[#allocation4 + $0x3]]
    %v220 = vstv %s219
    %v221 = vadd.f32 %v215, %v220
    %v222 = vadd.f32 %v216, %v220
    %v223 = vadd.f32 %v217, %v220
    %v224 = vadd.f32 %v218, %v220
    %v225 = vstv %s54
    %v226 = vmul.f32 %v66, %v225
    %v227 = vmul.f32 %v67, %v225
    %v228 = vmul.f32 %v68, %v225
    %v229 = vmul.f32 %v69, %v225
    %v230 = vadd.f32 %v221, %v226
    %v231 = vadd.f32 %v222, %v227
    %v232 = vadd.f32 %v223, %v228
    %v233 = vadd.f32 %v224, %v229
    %v234 = vstv %s55
    %v235 = vmul.f32 %v71, %v234
    %v236 = vmul.f32 %v72, %v234
    %v237 = vmul.f32 %v73, %v234
    %v238 = vmul.f32 %v74, %v234
    %v239 = vadd.f32 %v230, %v235
    %v240 = vadd.f32 %v231, %v236
    %v241 = vadd.f32 %v232, %v237
    %v242 = vadd.f32 %v233, %v238
    %v243 = vstv %s56
    %v244 = vmul.f32 %v76, %v243
    %v245 = vmul.f32 %v77, %v243
    %v246 = vmul.f32 %v78, %v243
    %v247 = vmul.f32 %v79, %v243
    %v248 = vadd.f32 %v239, %v244
    %v249 = vadd.f32 %v240, %v245
    %v250 = vadd.f32 %v241, %v246
    %v251 = vadd.f32 %v242, %v247
    %v252 = vmax.f32 %v248, 0.0
    %v253 = vmax.f32 %v249, 0.0
    %v254 = vmax.f32 %v250, 0.0
    %v255 = vmax.f32 %v251, 0.0
    %v256 = vadd.f32 %v210, %v252
    %v257 = vadd.f32 %v211, %v253
    %v258 = vadd.f32 %v212, %v254
    %v259 = vadd.f32 %v213, %v255
    %v260 = vstv %s57
    %v261 = vmul.f32 %v61, %v260
    %v262 = vmul.f32 %v62, %v260
    %v263 = vmul.f32 %v63, %v260
    %v264 = vmul.f32 %v64, %v260
    %s265 = sld [smem:[#allocation4 + $0x4]]
    %v266 = vstv %s265
    %v267 = vadd.f32 %v261, %v266
    %v268 = vadd.f32 %v262, %v266
    %v269 = vadd.f32 %v263, %v266
    %v270 = vadd.f32 %v264, %v266
    %v271 = vstv %s58
    %v272 = vmul.f32 %v66, %v271
    %v273 = vmul.f32 %v67, %v271
    %v274 = vmul.f32 %v68, %v271
    %v275 = vmul.f32 %v69, %v271
    %v276 = vadd.f32 %v267, %v272
    %v277 = vadd.f32 %v268, %v273
    %v278 = vadd.f32 %v269, %v274
    %v279 = vadd.f32 %v270, %v275
    %v280 = vstv %s59
    %v281 = vmul.f32 %v71, %v280
    %v282 = vmul.f32 %v72, %v280
    %v283 = vmul.f32 %v73, %v280
    %v284 = vmul.f32 %v74, %v280
    %v285 = vadd.f32 %v276, %v281
    %v286 = vadd.f32 %v277, %v282
    %v287 = vadd.f32 %v278, %v283
    %v288 = vadd.f32 %v279, %v284
    %v289 = vstv %s60
    %v290 = vmul.f32 %v76, %v289
    %v291 = vmul.f32 %v77, %v289
    %v292 = vmul.f32 %v78, %v289
    %v293 = vmul.f32 %v79, %v289
    %v294 = vadd.f32 %v285, %v290
    %v295 = vadd.f32 %v286, %v291
    %v296 = vadd.f32 %v287, %v292
    %v297 = vadd.f32 %v288, %v293
    %v298 = vmax.f32 %v294, 0.0
    %v299 = vmax.f32 %v295, 0.0
    %v300 = vmax.f32 %v296, 0.0
    %v301 = vmax.f32 %v297, 0.0
    %v302 = vadd.f32 %v256, %v298
    %v303 = vadd.f32 %v257, %v299
    %v304 = vadd.f32 %v258, %v300
    %v305 = vadd.f32 %v259, %v301
    %s306 = scalar_lea.vmem %s0, 128
    %v307 = vld [vmem:[%s306] sm:$0xff]
    %v308 = vld [vmem:[%s306 + $0x8] sm:$0xff]
    %v309 = vld [vmem:[%s306 + $0x10] sm:$0xff]
    %v310 = vld [vmem:[%s306 + $0x18] sm:$0xff]
    %s311 = scalar_lea.vmem %s0, 160
    %v312 = vld [vmem:[%s311] sm:$0xff]
    %v313 = vld [vmem:[%s311 + $0x8] sm:$0xff]
    %v314 = vld [vmem:[%s311 + $0x10] sm:$0xff]
    %v315 = vld [vmem:[%s311 + $0x18] sm:$0xff]
    %s316 = scalar_lea.vmem %s0, 192
    %v317 = vld [vmem:[%s316] sm:$0xff]
    %v318 = vld [vmem:[%s316 + $0x8] sm:$0xff]
    %v319 = vld [vmem:[%s316 + $0x10] sm:$0xff]
    %v320 = vld [vmem:[%s316 + $0x18] sm:$0xff]
    %s321 = scalar_lea.vmem %s0, 224
    %v322 = vld [vmem:[%s321] sm:$0xff]
    %v323 = vld [vmem:[%s321 + $0x8] sm:$0xff]
    %v324 = vld [vmem:[%s321 + $0x10] sm:$0xff]
    %v325 = vld [vmem:[%s321 + $0x18] sm:$0xff]
    %v326 = vmul.f32 %v307, %v80
    %v327 = vmul.f32 %v308, %v80
    %v328 = vmul.f32 %v309, %v80
    %v329 = vmul.f32 %v310, %v80
    %s330 = sld [smem:[#allocation4 + $0x80]]
    %v331 = vstv %s330
    %v332 = vadd.f32 %v326, %v331
    %v333 = vadd.f32 %v327, %v331
    %v334 = vadd.f32 %v328, %v331
    %v335 = vadd.f32 %v329, %v331
    %v336 = vmul.f32 %v312, %v91
    %v337 = vmul.f32 %v313, %v91
    %v338 = vmul.f32 %v314, %v91
    %v339 = vmul.f32 %v315, %v91
    %v340 = vadd.f32 %v332, %v336
    %v341 = vadd.f32 %v333, %v337
    %v342 = vadd.f32 %v334, %v338
    %v343 = vadd.f32 %v335, %v339
    %v344 = vmul.f32 %v317, %v100
    %v345 = vmul.f32 %v318, %v100
    %v346 = vmul.f32 %v319, %v100
    %v347 = vmul.f32 %v320, %v100
    %v348 = vadd.f32 %v340, %v344
    %v349 = vadd.f32 %v341, %v345
    %v350 = vadd.f32 %v342, %v346
    %v351 = vadd.f32 %v343, %v347
    %v352 = vmul.f32 %v322, %v109
    %v353 = vmul.f32 %v323, %v109
    %v354 = vmul.f32 %v324, %v109
    %v355 = vmul.f32 %v325, %v109
    %v356 = vadd.f32 %v348, %v352
    %v357 = vadd.f32 %v349, %v353
    %v358 = vadd.f32 %v350, %v354
    %v359 = vadd.f32 %v351, %v355
    %v360 = vmax.f32 %v356, 0.0
    %v361 = vmax.f32 %v357, 0.0
    %v362 = vmax.f32 %v358, 0.0
    %v363 = vmax.f32 %v359, 0.0
    %v364 = vmul.f32 %v307, %v122
    %v365 = vmul.f32 %v308, %v122
    %v366 = vmul.f32 %v309, %v122
    %v367 = vmul.f32 %v310, %v122
    %s368 = sld [smem:[#allocation4 + $0x81]]
    %v369 = vstv %s368
    %v370 = vadd.f32 %v364, %v369
    %v371 = vadd.f32 %v365, %v369
    %v372 = vadd.f32 %v366, %v369
    %v373 = vadd.f32 %v367, %v369
    %v374 = vmul.f32 %v312, %v133
    %v375 = vmul.f32 %v313, %v133
    %v376 = vmul.f32 %v314, %v133
    %v377 = vmul.f32 %v315, %v133
    %v378 = vadd.f32 %v370, %v374
    %v379 = vadd.f32 %v371, %v375
    %v380 = vadd.f32 %v372, %v376
    %v381 = vadd.f32 %v373, %v377
    %v382 = vmul.f32 %v317, %v142
    %v383 = vmul.f32 %v318, %v142
    %v384 = vmul.f32 %v319, %v142
    %v385 = vmul.f32 %v320, %v142
    %v386 = vadd.f32 %v378, %v382
    %v387 = vadd.f32 %v379, %v383
    %v388 = vadd.f32 %v380, %v384
    %v389 = vadd.f32 %v381, %v385
    %v390 = vmul.f32 %v322, %v151
    %v391 = vmul.f32 %v323, %v151
    %v392 = vmul.f32 %v324, %v151
    %v393 = vmul.f32 %v325, %v151
    %v394 = vadd.f32 %v386, %v390
    %v395 = vadd.f32 %v387, %v391
    %v396 = vadd.f32 %v388, %v392
    %v397 = vadd.f32 %v389, %v393
    %v398 = vmax.f32 %v394, 0.0
    %v399 = vmax.f32 %v395, 0.0
    %v400 = vmax.f32 %v396, 0.0
    %v401 = vmax.f32 %v397, 0.0
    %v402 = vadd.f32 %v360, %v398
    %v403 = vadd.f32 %v361, %v399
    %v404 = vadd.f32 %v362, %v400
    %v405 = vadd.f32 %v363, %v401
    %v406 = vmul.f32 %v307, %v168
    %v407 = vmul.f32 %v308, %v168
    %v408 = vmul.f32 %v309, %v168
    %v409 = vmul.f32 %v310, %v168
    %s410 = sld [smem:[#allocation4 + $0x82]]
    %v411 = vstv %s410
    %v412 = vadd.f32 %v406, %v411
    %v413 = vadd.f32 %v407, %v411
    %v414 = vadd.f32 %v408, %v411
    %v415 = vadd.f32 %v409, %v411
    %v416 = vmul.f32 %v312, %v179
    %v417 = vmul.f32 %v313, %v179
    %v418 = vmul.f32 %v314, %v179
    %v419 = vmul.f32 %v315, %v179
    %v420 = vadd.f32 %v412, %v416
    %v421 = vadd.f32 %v413, %v417
    %v422 = vadd.f32 %v414, %v418
    %v423 = vadd.f32 %v415, %v419
    %v424 = vmul.f32 %v317, %v188
    %v425 = vmul.f32 %v318, %v188
    %v426 = vmul.f32 %v319, %v188
    %v427 = vmul.f32 %v320, %v188
    %v428 = vadd.f32 %v420, %v424
    %v429 = vadd.f32 %v421, %v425
    %v430 = vadd.f32 %v422, %v426
    %v431 = vadd.f32 %v423, %v427
    %v432 = vmul.f32 %v322, %v197
    %v433 = vmul.f32 %v323, %v197
    %v434 = vmul.f32 %v324, %v197
    %v435 = vmul.f32 %v325, %v197
    %v436 = vadd.f32 %v428, %v432
    %v437 = vadd.f32 %v429, %v433
    %v438 = vadd.f32 %v430, %v434
    %v439 = vadd.f32 %v431, %v435
    %v440 = vmax.f32 %v436, 0.0
    %v441 = vmax.f32 %v437, 0.0
    %v442 = vmax.f32 %v438, 0.0
    %v443 = vmax.f32 %v439, 0.0
    %v444 = vadd.f32 %v402, %v440
    %v445 = vadd.f32 %v403, %v441
    %v446 = vadd.f32 %v404, %v442
    %v447 = vadd.f32 %v405, %v443
    %v448 = vmul.f32 %v307, %v214
    %v449 = vmul.f32 %v308, %v214
    %v450 = vmul.f32 %v309, %v214
    %v451 = vmul.f32 %v310, %v214
    %s452 = sld [smem:[#allocation4 + $0x83]]
    %v453 = vstv %s452
    %v454 = vadd.f32 %v448, %v453
    %v455 = vadd.f32 %v449, %v453
    %v456 = vadd.f32 %v450, %v453
    %v457 = vadd.f32 %v451, %v453
    %v458 = vmul.f32 %v312, %v225
    %v459 = vmul.f32 %v313, %v225
    %v460 = vmul.f32 %v314, %v225
    %v461 = vmul.f32 %v315, %v225
    %v462 = vadd.f32 %v454, %v458
    %v463 = vadd.f32 %v455, %v459
    %v464 = vadd.f32 %v456, %v460
    %v465 = vadd.f32 %v457, %v461
    %v466 = vmul.f32 %v317, %v234
    %v467 = vmul.f32 %v318, %v234
    %v468 = vmul.f32 %v319, %v234
    %v469 = vmul.f32 %v320, %v234
    %v470 = vadd.f32 %v462, %v466
    %v471 = vadd.f32 %v463, %v467
    %v472 = vadd.f32 %v464, %v468
    %v473 = vadd.f32 %v465, %v469
    %v474 = vmul.f32 %v322, %v243
    %v475 = vmul.f32 %v323, %v243
    %v476 = vmul.f32 %v324, %v243
    %v477 = vmul.f32 %v325, %v243
    %v478 = vadd.f32 %v470, %v474
    %v479 = vadd.f32 %v471, %v475
    %v480 = vadd.f32 %v472, %v476
    %v481 = vadd.f32 %v473, %v477
    %v482 = vmax.f32 %v478, 0.0
    %v483 = vmax.f32 %v479, 0.0
    %v484 = vmax.f32 %v480, 0.0
    %v485 = vmax.f32 %v481, 0.0
    %v486 = vadd.f32 %v444, %v482
    %v487 = vadd.f32 %v445, %v483
    %v488 = vadd.f32 %v446, %v484
    %v489 = vadd.f32 %v447, %v485
    %v490 = vmul.f32 %v307, %v260
    %v491 = vmul.f32 %v308, %v260
    %v492 = vmul.f32 %v309, %v260
    %v493 = vmul.f32 %v310, %v260
    %s494 = sld [smem:[#allocation4 + $0x84]]
    %v495 = vstv %s494
    %v496 = vadd.f32 %v490, %v495
    %v497 = vadd.f32 %v491, %v495
    %v498 = vadd.f32 %v492, %v495
    %v499 = vadd.f32 %v493, %v495
    %v500 = vmul.f32 %v312, %v271
    %v501 = vmul.f32 %v313, %v271
    %v502 = vmul.f32 %v314, %v271
    %v503 = vmul.f32 %v315, %v271
    %v504 = vadd.f32 %v496, %v500
    %v505 = vadd.f32 %v497, %v501
    %v506 = vadd.f32 %v498, %v502
    %v507 = vadd.f32 %v499, %v503
    %v508 = vmul.f32 %v317, %v280
    %v509 = vmul.f32 %v318, %v280
    %v510 = vmul.f32 %v319, %v280
    %v511 = vmul.f32 %v320, %v280
    %v512 = vadd.f32 %v504, %v508
    %v513 = vadd.f32 %v505, %v509
    %v514 = vadd.f32 %v506, %v510
    %v515 = vadd.f32 %v507, %v511
    %v516 = vmul.f32 %v322, %v289
    %v517 = vmul.f32 %v323, %v289
    %v518 = vmul.f32 %v324, %v289
    %v519 = vmul.f32 %v325, %v289
    %v520 = vadd.f32 %v512, %v516
    %v521 = vadd.f32 %v513, %v517
    %v522 = vadd.f32 %v514, %v518
    %v523 = vadd.f32 %v515, %v519
    %v524 = vmax.f32 %v520, 0.0
    %v525 = vmax.f32 %v521, 0.0
    %v526 = vmax.f32 %v522, 0.0
    %v527 = vmax.f32 %v523, 0.0
    %v528 = vadd.f32 %v486, %v524
    %v529 = vadd.f32 %v487, %v525
    %v530 = vadd.f32 %v488, %v526
    %v531 = vadd.f32 %v489, %v527
    %s532 = scalar_lea.vmem %s0, 256
    %v533 = vld [vmem:[%s532] sm:$0xff]
    %v534 = vld [vmem:[%s532 + $0x8] sm:$0xff]
    %v535 = vld [vmem:[%s532 + $0x10] sm:$0xff]
    %v536 = vld [vmem:[%s532 + $0x18] sm:$0xff]
    %s537 = scalar_lea.vmem %s0, 288
    %v538 = vld [vmem:[%s537] sm:$0xff]
    %v539 = vld [vmem:[%s537 + $0x8] sm:$0xff]
    %v540 = vld [vmem:[%s537 + $0x10] sm:$0xff]
    %v541 = vld [vmem:[%s537 + $0x18] sm:$0xff]
    %s542 = scalar_lea.vmem %s0, 320
    %v543 = vld [vmem:[%s542] sm:$0xff]
    %v544 = vld [vmem:[%s542 + $0x8] sm:$0xff]
    %v545 = vld [vmem:[%s542 + $0x10] sm:$0xff]
    %v546 = vld [vmem:[%s542 + $0x18] sm:$0xff]
    %s547 = scalar_lea.vmem %s0, 352
    %v548 = vld [vmem:[%s547] sm:$0xff]
    %v549 = vld [vmem:[%s547 + $0x8] sm:$0xff]
    %v550 = vld [vmem:[%s547 + $0x10] sm:$0xff]
    %v551 = vld [vmem:[%s547 + $0x18] sm:$0xff]
    %v552 = vmul.f32 %v533, %v80
    %v553 = vmul.f32 %v534, %v80
    %v554 = vmul.f32 %v535, %v80
    %v555 = vmul.f32 %v536, %v80
    %s556 = sld [smem:[#allocation4 + $0x100]]
    %v557 = vstv %s556
    %v558 = vadd.f32 %v552, %v557
    %v559 = vadd.f32 %v553, %v557
    %v560 = vadd.f32 %v554, %v557
    %v561 = vadd.f32 %v555, %v557
    %v562 = vmul.f32 %v538, %v91
    %v563 = vmul.f32 %v539, %v91
    %v564 = vmul.f32 %v540, %v91
    %v565 = vmul.f32 %v541, %v91
    %v566 = vadd.f32 %v558, %v562
    %v567 = vadd.f32 %v559, %v563
    %v568 = vadd.f32 %v560, %v564
    %v569 = vadd.f32 %v561, %v565
    %v570 = vmul.f32 %v543, %v100
    %v571 = vmul.f32 %v544, %v100
    %v572 = vmul.f32 %v545, %v100
    %v573 = vmul.f32 %v546, %v100
    %v574 = vadd.f32 %v566, %v570
    %v575 = vadd.f32 %v567, %v571
    %v576 = vadd.f32 %v568, %v572
    %v577 = vadd.f32 %v569, %v573
    %v578 = vmul.f32 %v548, %v109
    %v579 = vmul.f32 %v549, %v109
    %v580 = vmul.f32 %v550, %v109
    %v581 = vmul.f32 %v551, %v109
    %v582 = vadd.f32 %v574, %v578
    %v583 = vadd.f32 %v575, %v579
    %v584 = vadd.f32 %v576, %v580
    %v585 = vadd.f32 %v577, %v581
    %v586 = vmax.f32 %v582, 0.0
    %v587 = vmax.f32 %v583, 0.0
    %v588 = vmax.f32 %v584, 0.0
    %v589 = vmax.f32 %v585, 0.0
    %v590 = vmul.f32 %v533, %v122
    %v591 = vmul.f32 %v534, %v122
    %v592 = vmul.f32 %v535, %v122
    %v593 = vmul.f32 %v536, %v122
    %s594 = sld [smem:[#allocation4 + $0x101]]
    %v595 = vstv %s594
    %v596 = vadd.f32 %v590, %v595
    %v597 = vadd.f32 %v591, %v595
    %v598 = vadd.f32 %v592, %v595
    %v599 = vadd.f32 %v593, %v595
    %v600 = vmul.f32 %v538, %v133
    %v601 = vmul.f32 %v539, %v133
    %v602 = vmul.f32 %v540, %v133
    %v603 = vmul.f32 %v541, %v133
    %v604 = vadd.f32 %v596, %v600
    %v605 = vadd.f32 %v597, %v601
    %v606 = vadd.f32 %v598, %v602
    %v607 = vadd.f32 %v599, %v603
    %v608 = vmul.f32 %v543, %v142
    %v609 = vmul.f32 %v544, %v142
    %v610 = vmul.f32 %v545, %v142
    %v611 = vmul.f32 %v546, %v142
    %v612 = vadd.f32 %v604, %v608
    %v613 = vadd.f32 %v605, %v609
    %v614 = vadd.f32 %v606, %v610
    %v615 = vadd.f32 %v607, %v611
    %v616 = vmul.f32 %v548, %v151
    %v617 = vmul.f32 %v549, %v151
    %v618 = vmul.f32 %v550, %v151
    %v619 = vmul.f32 %v551, %v151
    %v620 = vadd.f32 %v612, %v616
    %v621 = vadd.f32 %v613, %v617
    %v622 = vadd.f32 %v614, %v618
    %v623 = vadd.f32 %v615, %v619
    %v624 = vmax.f32 %v620, 0.0
    %v625 = vmax.f32 %v621, 0.0
    %v626 = vmax.f32 %v622, 0.0
    %v627 = vmax.f32 %v623, 0.0
    %v628 = vadd.f32 %v586, %v624
    %v629 = vadd.f32 %v587, %v625
    %v630 = vadd.f32 %v588, %v626
    %v631 = vadd.f32 %v589, %v627
    %v632 = vmul.f32 %v533, %v168
    %v633 = vmul.f32 %v534, %v168
    %v634 = vmul.f32 %v535, %v168
    %v635 = vmul.f32 %v536, %v168
    %s636 = sld [smem:[#allocation4 + $0x102]]
    %v637 = vstv %s636
    %v638 = vadd.f32 %v632, %v637
    %v639 = vadd.f32 %v633, %v637
    %v640 = vadd.f32 %v634, %v637
    %v641 = vadd.f32 %v635, %v637
    %v642 = vmul.f32 %v538, %v179
    %v643 = vmul.f32 %v539, %v179
    %v644 = vmul.f32 %v540, %v179
    %v645 = vmul.f32 %v541, %v179
    %v646 = vadd.f32 %v638, %v642
    %v647 = vadd.f32 %v639, %v643
    %v648 = vadd.f32 %v640, %v644
    %v649 = vadd.f32 %v641, %v645
    %v650 = vmul.f32 %v543, %v188
    %v651 = vmul.f32 %v544, %v188
    %v652 = vmul.f32 %v545, %v188
    %v653 = vmul.f32 %v546, %v188
    %v654 = vadd.f32 %v646, %v650
    %v655 = vadd.f32 %v647, %v651
    %v656 = vadd.f32 %v648, %v652
    %v657 = vadd.f32 %v649, %v653
    %v658 = vmul.f32 %v548, %v197
    %v659 = vmul.f32 %v549, %v197
    %v660 = vmul.f32 %v550, %v197
    %v661 = vmul.f32 %v551, %v197
    %v662 = vadd.f32 %v654, %v658
    %v663 = vadd.f32 %v655, %v659
    %v664 = vadd.f32 %v656, %v660
    %v665 = vadd.f32 %v657, %v661
    %v666 = vmax.f32 %v662, 0.0
    %v667 = vmax.f32 %v663, 0.0
    %v668 = vmax.f32 %v664, 0.0
    %v669 = vmax.f32 %v665, 0.0
    %v670 = vadd.f32 %v628, %v666
    %v671 = vadd.f32 %v629, %v667
    %v672 = vadd.f32 %v630, %v668
    %v673 = vadd.f32 %v631, %v669
    %v674 = vmul.f32 %v533, %v214
    %v675 = vmul.f32 %v534, %v214
    %v676 = vmul.f32 %v535, %v214
    %v677 = vmul.f32 %v536, %v214
    %s678 = sld [smem:[#allocation4 + $0x103]]
    %v679 = vstv %s678
    %v680 = vadd.f32 %v674, %v679
    %v681 = vadd.f32 %v675, %v679
    %v682 = vadd.f32 %v676, %v679
    %v683 = vadd.f32 %v677, %v679
    %v684 = vmul.f32 %v538, %v225
    %v685 = vmul.f32 %v539, %v225
    %v686 = vmul.f32 %v540, %v225
    %v687 = vmul.f32 %v541, %v225
    %v688 = vadd.f32 %v680, %v684
    %v689 = vadd.f32 %v681, %v685
    %v690 = vadd.f32 %v682, %v686
    %v691 = vadd.f32 %v683, %v687
    %v692 = vmul.f32 %v543, %v234
    %v693 = vmul.f32 %v544, %v234
    %v694 = vmul.f32 %v545, %v234
    %v695 = vmul.f32 %v546, %v234
    %v696 = vadd.f32 %v688, %v692
    %v697 = vadd.f32 %v689, %v693
    %v698 = vadd.f32 %v690, %v694
    %v699 = vadd.f32 %v691, %v695
    %v700 = vmul.f32 %v548, %v243
    %v701 = vmul.f32 %v549, %v243
    %v702 = vmul.f32 %v550, %v243
    %v703 = vmul.f32 %v551, %v243
    %v704 = vadd.f32 %v696, %v700
    %v705 = vadd.f32 %v697, %v701
    %v706 = vadd.f32 %v698, %v702
    %v707 = vadd.f32 %v699, %v703
    %v708 = vmax.f32 %v704, 0.0
    %v709 = vmax.f32 %v705, 0.0
    %v710 = vmax.f32 %v706, 0.0
    %v711 = vmax.f32 %v707, 0.0
    %v712 = vadd.f32 %v670, %v708
    %v713 = vadd.f32 %v671, %v709
    %v714 = vadd.f32 %v672, %v710
    %v715 = vadd.f32 %v673, %v711
    %v716 = vmul.f32 %v533, %v260
    %v717 = vmul.f32 %v534, %v260
    %v718 = vmul.f32 %v535, %v260
    %v719 = vmul.f32 %v536, %v260
    %s720 = sld [smem:[#allocation4 + $0x104]]
    %v721 = vstv %s720
    %v722 = vadd.f32 %v716, %v721
    %v723 = vadd.f32 %v717, %v721
    %v724 = vadd.f32 %v718, %v721
    %v725 = vadd.f32 %v719, %v721
    %v726 = vmul.f32 %v538, %v271
    %v727 = vmul.f32 %v539, %v271
    %v728 = vmul.f32 %v540, %v271
    %v729 = vmul.f32 %v541, %v271
    %v730 = vadd.f32 %v722, %v726
    %v731 = vadd.f32 %v723, %v727
    %v732 = vadd.f32 %v724, %v728
    %v733 = vadd.f32 %v725, %v729
    %v734 = vmul.f32 %v543, %v280
    %v735 = vmul.f32 %v544, %v280
    %v736 = vmul.f32 %v545, %v280
    %v737 = vmul.f32 %v546, %v280
    %v738 = vadd.f32 %v730, %v734
    %v739 = vadd.f32 %v731, %v735
    %v740 = vadd.f32 %v732, %v736
    %v741 = vadd.f32 %v733, %v737
    %v742 = vmul.f32 %v548, %v289
    %v743 = vmul.f32 %v549, %v289
    %v744 = vmul.f32 %v550, %v289
    %v745 = vmul.f32 %v551, %v289
    %v746 = vadd.f32 %v738, %v742
    %v747 = vadd.f32 %v739, %v743
    %v748 = vadd.f32 %v740, %v744
    %v749 = vadd.f32 %v741, %v745
    %v750 = vmax.f32 %v746, 0.0
    %v751 = vmax.f32 %v747, 0.0
    %v752 = vmax.f32 %v748, 0.0
    %v753 = vmax.f32 %v749, 0.0
    %v754 = vadd.f32 %v712, %v750
    %v755 = vadd.f32 %v713, %v751
    %v756 = vadd.f32 %v714, %v752
    %v757 = vadd.f32 %v715, %v753
    %s758 = scalar_lea.vmem %s0, 384
    %v759 = vld [vmem:[%s758] sm:$0xff]
    %v760 = vld [vmem:[%s758 + $0x8] sm:$0xff]
    %v761 = vld [vmem:[%s758 + $0x10] sm:$0xff]
    %v762 = vld [vmem:[%s758 + $0x18] sm:$0xff]
    %s763 = scalar_lea.vmem %s0, 416
    %v764 = vld [vmem:[%s763] sm:$0xff]
    %v765 = vld [vmem:[%s763 + $0x8] sm:$0xff]
    %v766 = vld [vmem:[%s763 + $0x10] sm:$0xff]
    %v767 = vld [vmem:[%s763 + $0x18] sm:$0xff]
    %s768 = scalar_lea.vmem %s0, 448
    %v769 = vld [vmem:[%s768] sm:$0xff]
    %v770 = vld [vmem:[%s768 + $0x8] sm:$0xff]
    %v771 = vld [vmem:[%s768 + $0x10] sm:$0xff]
    %v772 = vld [vmem:[%s768 + $0x18] sm:$0xff]
    %s773 = scalar_lea.vmem %s0, 480
    %v774 = vld [vmem:[%s773] sm:$0xff]
    %v775 = vld [vmem:[%s773 + $0x8] sm:$0xff]
    %v776 = vld [vmem:[%s773 + $0x10] sm:$0xff]
    %v777 = vld [vmem:[%s773 + $0x18] sm:$0xff]
    %v778 = vmul.f32 %v759, %v80
    %v779 = vmul.f32 %v760, %v80
    %v780 = vmul.f32 %v761, %v80
    %v781 = vmul.f32 %v762, %v80
    %s782 = sld [smem:[#allocation4 + $0x180]]
    %v783 = vstv %s782
    %v784 = vadd.f32 %v778, %v783
    %v785 = vadd.f32 %v779, %v783
    %v786 = vadd.f32 %v780, %v783
    %v787 = vadd.f32 %v781, %v783
    %v788 = vmul.f32 %v764, %v91
    %v789 = vmul.f32 %v765, %v91
    %v790 = vmul.f32 %v766, %v91
    %v791 = vmul.f32 %v767, %v91
    %v792 = vadd.f32 %v784, %v788
    %v793 = vadd.f32 %v785, %v789
    %v794 = vadd.f32 %v786, %v790
    %v795 = vadd.f32 %v787, %v791
    %v796 = vmul.f32 %v769, %v100
    %v797 = vmul.f32 %v770, %v100
    %v798 = vmul.f32 %v771, %v100
    %v799 = vmul.f32 %v772, %v100
    %v800 = vadd.f32 %v792, %v796
    %v801 = vadd.f32 %v793, %v797
    %v802 = vadd.f32 %v794, %v798
    %v803 = vadd.f32 %v795, %v799
    %v804 = vmul.f32 %v774, %v109
    %v805 = vmul.f32 %v775, %v109
    %v806 = vmul.f32 %v776, %v109
    %v807 = vmul.f32 %v777, %v109
    %v808 = vadd.f32 %v800, %v804
    %v809 = vadd.f32 %v801, %v805
    %v810 = vadd.f32 %v802, %v806
    %v811 = vadd.f32 %v803, %v807
    %v812 = vmax.f32 %v808, 0.0
    %v813 = vmax.f32 %v809, 0.0
    %v814 = vmax.f32 %v810, 0.0
    %v815 = vmax.f32 %v811, 0.0
    %v816 = vmul.f32 %v759, %v122
    %v817 = vmul.f32 %v760, %v122
    %v818 = vmul.f32 %v761, %v122
    %v819 = vmul.f32 %v762, %v122
    %s820 = sld [smem:[#allocation4 + $0x181]]
    %v821 = vstv %s820
    %v822 = vadd.f32 %v816, %v821
    %v823 = vadd.f32 %v817, %v821
    %v824 = vadd.f32 %v818, %v821
    %v825 = vadd.f32 %v819, %v821
    %v826 = vmul.f32 %v764, %v133
    %v827 = vmul.f32 %v765, %v133
    %v828 = vmul.f32 %v766, %v133
    %v829 = vmul.f32 %v767, %v133
    %v830 = vadd.f32 %v822, %v826
    %v831 = vadd.f32 %v823, %v827
    %v832 = vadd.f32 %v824, %v828
    %v833 = vadd.f32 %v825, %v829
    %v834 = vmul.f32 %v769, %v142
    %v835 = vmul.f32 %v770, %v142
    %v836 = vmul.f32 %v771, %v142
    %v837 = vmul.f32 %v772, %v142
    %v838 = vadd.f32 %v830, %v834
    %v839 = vadd.f32 %v831, %v835
    %v840 = vadd.f32 %v832, %v836
    %v841 = vadd.f32 %v833, %v837
    %v842 = vmul.f32 %v774, %v151
    %v843 = vmul.f32 %v775, %v151
    %v844 = vmul.f32 %v776, %v151
    %v845 = vmul.f32 %v777, %v151
    %v846 = vadd.f32 %v838, %v842
    %v847 = vadd.f32 %v839, %v843
    %v848 = vadd.f32 %v840, %v844
    %v849 = vadd.f32 %v841, %v845
    %v850 = vmax.f32 %v846, 0.0
    %v851 = vmax.f32 %v847, 0.0
    %v852 = vmax.f32 %v848, 0.0
    %v853 = vmax.f32 %v849, 0.0
    %v854 = vadd.f32 %v812, %v850
    %v855 = vadd.f32 %v813, %v851
    %v856 = vadd.f32 %v814, %v852
    %v857 = vadd.f32 %v815, %v853
    %v858 = vmul.f32 %v759, %v168
    %v859 = vmul.f32 %v760, %v168
    %v860 = vmul.f32 %v761, %v168
    %v861 = vmul.f32 %v762, %v168
    %s862 = sld [smem:[#allocation4 + $0x182]]
    %v863 = vstv %s862
    %v864 = vadd.f32 %v858, %v863
    %v865 = vadd.f32 %v859, %v863
    %v866 = vadd.f32 %v860, %v863
    %v867 = vadd.f32 %v861, %v863
    %v868 = vmul.f32 %v764, %v179
    %v869 = vmul.f32 %v765, %v179
    %v870 = vmul.f32 %v766, %v179
    %v871 = vmul.f32 %v767, %v179
    %v872 = vadd.f32 %v864, %v868
    %v873 = vadd.f32 %v865, %v869
    %v874 = vadd.f32 %v866, %v870
    %v875 = vadd.f32 %v867, %v871
    %v876 = vmul.f32 %v769, %v188
    %v877 = vmul.f32 %v770, %v188
    %v878 = vmul.f32 %v771, %v188
    %v879 = vmul.f32 %v772, %v188
    %v880 = vadd.f32 %v872, %v876
    %v881 = vadd.f32 %v873, %v877
    %v882 = vadd.f32 %v874, %v878
    %v883 = vadd.f32 %v875, %v879
    %v884 = vmul.f32 %v774, %v197
    %v885 = vmul.f32 %v775, %v197
    %v886 = vmul.f32 %v776, %v197
    %v887 = vmul.f32 %v777, %v197
    %v888 = vadd.f32 %v880, %v884
    %v889 = vadd.f32 %v881, %v885
    %v890 = vadd.f32 %v882, %v886
    %v891 = vadd.f32 %v883, %v887
    %v892 = vmax.f32 %v888, 0.0
    %v893 = vmax.f32 %v889, 0.0
    %v894 = vmax.f32 %v890, 0.0
    %v895 = vmax.f32 %v891, 0.0
    %v896 = vadd.f32 %v854, %v892
    %v897 = vadd.f32 %v855, %v893
    %v898 = vadd.f32 %v856, %v894
    %v899 = vadd.f32 %v857, %v895
    %v900 = vmul.f32 %v759, %v214
    %v901 = vmul.f32 %v760, %v214
    %v902 = vmul.f32 %v761, %v214
    %v903 = vmul.f32 %v762, %v214
    %s904 = sld [smem:[#allocation4 + $0x183]]
    %v905 = vstv %s904
    %v906 = vadd.f32 %v900, %v905
    %v907 = vadd.f32 %v901, %v905
    %v908 = vadd.f32 %v902, %v905
    %v909 = vadd.f32 %v903, %v905
    %v910 = vmul.f32 %v764, %v225
    %v911 = vmul.f32 %v765, %v225
    %v912 = vmul.f32 %v766, %v225
    %v913 = vmul.f32 %v767, %v225
    %v914 = vadd.f32 %v906, %v910
    %v915 = vadd.f32 %v907, %v911
    %v916 = vadd.f32 %v908, %v912
    %v917 = vadd.f32 %v909, %v913
    %v918 = vmul.f32 %v769, %v234
    %v919 = vmul.f32 %v770, %v234
    %v920 = vmul.f32 %v771, %v234
    %v921 = vmul.f32 %v772, %v234
    %v922 = vadd.f32 %v914, %v918
    %v923 = vadd.f32 %v915, %v919
    %v924 = vadd.f32 %v916, %v920
    %v925 = vadd.f32 %v917, %v921
    %v926 = vmul.f32 %v774, %v243
    %v927 = vmul.f32 %v775, %v243
    %v928 = vmul.f32 %v776, %v243
    %v929 = vmul.f32 %v777, %v243
    %v930 = vadd.f32 %v922, %v926
    %v931 = vadd.f32 %v923, %v927
    %v932 = vadd.f32 %v924, %v928
    %v933 = vadd.f32 %v925, %v929
    %v934 = vmax.f32 %v930, 0.0
    %v935 = vmax.f32 %v931, 0.0
    %v936 = vmax.f32 %v932, 0.0
    %v937 = vmax.f32 %v933, 0.0
    %v938 = vadd.f32 %v896, %v934
    %v939 = vadd.f32 %v897, %v935
    %v940 = vadd.f32 %v898, %v936
    %v941 = vadd.f32 %v899, %v937
    %v942 = vmul.f32 %v759, %v260
    %v943 = vmul.f32 %v760, %v260
    %v944 = vmul.f32 %v761, %v260
    %v945 = vmul.f32 %v762, %v260
    %s946 = sld [smem:[#allocation4 + $0x184]]
    %v947 = vstv %s946
    %v948 = vadd.f32 %v942, %v947
    %v949 = vadd.f32 %v943, %v947
    %v950 = vadd.f32 %v944, %v947
    %v951 = vadd.f32 %v945, %v947
    %v952 = vmul.f32 %v764, %v271
    %v953 = vmul.f32 %v765, %v271
    %v954 = vmul.f32 %v766, %v271
    %v955 = vmul.f32 %v767, %v271
    %v956 = vadd.f32 %v948, %v952
    %v957 = vadd.f32 %v949, %v953
    %v958 = vadd.f32 %v950, %v954
    %v959 = vadd.f32 %v951, %v955
    %v960 = vmul.f32 %v769, %v280
    %v961 = vmul.f32 %v770, %v280
    %v962 = vmul.f32 %v771, %v280
    %v963 = vmul.f32 %v772, %v280
    %v964 = vadd.f32 %v956, %v960
    %v965 = vadd.f32 %v957, %v961
    %v966 = vadd.f32 %v958, %v962
    %v967 = vadd.f32 %v959, %v963
    %v968 = vmul.f32 %v774, %v289
    %v969 = vmul.f32 %v775, %v289
    %v970 = vmul.f32 %v776, %v289
    %v971 = vmul.f32 %v777, %v289
    %v972 = vadd.f32 %v964, %v968
    %v973 = vadd.f32 %v965, %v969
    %v974 = vadd.f32 %v966, %v970
    %v975 = vadd.f32 %v967, %v971
    %v976 = vmax.f32 %v972, 0.0
    %v977 = vmax.f32 %v973, 0.0
    %v978 = vmax.f32 %v974, 0.0
    %v979 = vmax.f32 %v975, 0.0
    %v980 = vadd.f32 %v938, %v976
    %v981 = vadd.f32 %v939, %v977
    %v982 = vadd.f32 %v940, %v978
    %v983 = vadd.f32 %v941, %v979
    %s984 = scalar_lea.vmem %s0, 512
    %v985 = vld [vmem:[%s984] sm:$0xff]
    %v986 = vld [vmem:[%s984 + $0x8] sm:$0xff]
    %v987 = vld [vmem:[%s984 + $0x10] sm:$0xff]
    %v988 = vld [vmem:[%s984 + $0x18] sm:$0xff]
    %s989 = scalar_lea.vmem %s0, 544
    %v990 = vld [vmem:[%s989] sm:$0xff]
    %v991 = vld [vmem:[%s989 + $0x8] sm:$0xff]
    %v992 = vld [vmem:[%s989 + $0x10] sm:$0xff]
    %v993 = vld [vmem:[%s989 + $0x18] sm:$0xff]
    %s994 = scalar_lea.vmem %s0, 576
    %v995 = vld [vmem:[%s994] sm:$0xff]
    %v996 = vld [vmem:[%s994 + $0x8] sm:$0xff]
    %v997 = vld [vmem:[%s994 + $0x10] sm:$0xff]
    %v998 = vld [vmem:[%s994 + $0x18] sm:$0xff]
    %s999 = scalar_lea.vmem %s0, 608
    %v1000 = vld [vmem:[%s999] sm:$0xff]
    %v1001 = vld [vmem:[%s999 + $0x8] sm:$0xff]
    %v1002 = vld [vmem:[%s999 + $0x10] sm:$0xff]
    %v1003 = vld [vmem:[%s999 + $0x18] sm:$0xff]
    %v1004 = vmul.f32 %v985, %v80
    %v1005 = vmul.f32 %v986, %v80
    %v1006 = vmul.f32 %v987, %v80
    %v1007 = vmul.f32 %v988, %v80
    %s1008 = sld [smem:[#allocation4 + $0x200]]
    %v1009 = vstv %s1008
    %v1010 = vadd.f32 %v1004, %v1009
    %v1011 = vadd.f32 %v1005, %v1009
    %v1012 = vadd.f32 %v1006, %v1009
    %v1013 = vadd.f32 %v1007, %v1009
    %v1014 = vmul.f32 %v990, %v91
    %v1015 = vmul.f32 %v991, %v91
    %v1016 = vmul.f32 %v992, %v91
    %v1017 = vmul.f32 %v993, %v91
    %v1018 = vadd.f32 %v1010, %v1014
    %v1019 = vadd.f32 %v1011, %v1015
    %v1020 = vadd.f32 %v1012, %v1016
    %v1021 = vadd.f32 %v1013, %v1017
    %v1022 = vmul.f32 %v995, %v100
    %v1023 = vmul.f32 %v996, %v100
    %v1024 = vmul.f32 %v997, %v100
    %v1025 = vmul.f32 %v998, %v100
    %v1026 = vadd.f32 %v1018, %v1022
    %v1027 = vadd.f32 %v1019, %v1023
    %v1028 = vadd.f32 %v1020, %v1024
    %v1029 = vadd.f32 %v1021, %v1025
    %v1030 = vmul.f32 %v1000, %v109
    %v1031 = vmul.f32 %v1001, %v109
    %v1032 = vmul.f32 %v1002, %v109
    %v1033 = vmul.f32 %v1003, %v109
    %v1034 = vadd.f32 %v1026, %v1030
    %v1035 = vadd.f32 %v1027, %v1031
    %v1036 = vadd.f32 %v1028, %v1032
    %v1037 = vadd.f32 %v1029, %v1033
    %v1038 = vmax.f32 %v1034, 0.0
    %v1039 = vmax.f32 %v1035, 0.0
    %v1040 = vmax.f32 %v1036, 0.0
    %v1041 = vmax.f32 %v1037, 0.0
    %v1042 = vmul.f32 %v985, %v122
    %v1043 = vmul.f32 %v986, %v122
    %v1044 = vmul.f32 %v987, %v122
    %v1045 = vmul.f32 %v988, %v122
    %s1046 = sld [smem:[#allocation4 + $0x201]]
    %v1047 = vstv %s1046
    %v1048 = vadd.f32 %v1042, %v1047
    %v1049 = vadd.f32 %v1043, %v1047
    %v1050 = vadd.f32 %v1044, %v1047
    %v1051 = vadd.f32 %v1045, %v1047
    %v1052 = vmul.f32 %v990, %v133
    %v1053 = vmul.f32 %v991, %v133
    %v1054 = vmul.f32 %v992, %v133
    %v1055 = vmul.f32 %v993, %v133
    %v1056 = vadd.f32 %v1048, %v1052
    %v1057 = vadd.f32 %v1049, %v1053
    %v1058 = vadd.f32 %v1050, %v1054
    %v1059 = vadd.f32 %v1051, %v1055
    %v1060 = vmul.f32 %v995, %v142
    %v1061 = vmul.f32 %v996, %v142
    %v1062 = vmul.f32 %v997, %v142
    %v1063 = vmul.f32 %v998, %v142
    %v1064 = vadd.f32 %v1056, %v1060
    %v1065 = vadd.f32 %v1057, %v1061
    %v1066 = vadd.f32 %v1058, %v1062
    %v1067 = vadd.f32 %v1059, %v1063
    %v1068 = vmul.f32 %v1000, %v151
    %v1069 = vmul.f32 %v1001, %v151
    %v1070 = vmul.f32 %v1002, %v151
    %v1071 = vmul.f32 %v1003, %v151
    %v1072 = vadd.f32 %v1064, %v1068
    %v1073 = vadd.f32 %v1065, %v1069
    %v1074 = vadd.f32 %v1066, %v1070
    %v1075 = vadd.f32 %v1067, %v1071
    %v1076 = vmax.f32 %v1072, 0.0
    %v1077 = vmax.f32 %v1073, 0.0
    %v1078 = vmax.f32 %v1074, 0.0
    %v1079 = vmax.f32 %v1075, 0.0
    %v1080 = vadd.f32 %v1038, %v1076
    %v1081 = vadd.f32 %v1039, %v1077
    %v1082 = vadd.f32 %v1040, %v1078
    %v1083 = vadd.f32 %v1041, %v1079
    %v1084 = vmul.f32 %v985, %v168
    %v1085 = vmul.f32 %v986, %v168
    %v1086 = vmul.f32 %v987, %v168
    %v1087 = vmul.f32 %v988, %v168
    %s1088 = sld [smem:[#allocation4 + $0x202]]
    %v1089 = vstv %s1088
    %v1090 = vadd.f32 %v1084, %v1089
    %v1091 = vadd.f32 %v1085, %v1089
    %v1092 = vadd.f32 %v1086, %v1089
    %v1093 = vadd.f32 %v1087, %v1089
    %v1094 = vmul.f32 %v990, %v179
    %v1095 = vmul.f32 %v991, %v179
    %v1096 = vmul.f32 %v992, %v179
    %v1097 = vmul.f32 %v993, %v179
    %v1098 = vadd.f32 %v1090, %v1094
    %v1099 = vadd.f32 %v1091, %v1095
    %v1100 = vadd.f32 %v1092, %v1096
    %v1101 = vadd.f32 %v1093, %v1097
    %v1102 = vmul.f32 %v995, %v188
    %v1103 = vmul.f32 %v996, %v188
    %v1104 = vmul.f32 %v997, %v188
    %v1105 = vmul.f32 %v998, %v188
    %v1106 = vadd.f32 %v1098, %v1102
    %v1107 = vadd.f32 %v1099, %v1103
    %v1108 = vadd.f32 %v1100, %v1104
    %v1109 = vadd.f32 %v1101, %v1105
    %v1110 = vmul.f32 %v1000, %v197
    %v1111 = vmul.f32 %v1001, %v197
    %v1112 = vmul.f32 %v1002, %v197
    %v1113 = vmul.f32 %v1003, %v197
    %v1114 = vadd.f32 %v1106, %v1110
    %v1115 = vadd.f32 %v1107, %v1111
    %v1116 = vadd.f32 %v1108, %v1112
    %v1117 = vadd.f32 %v1109, %v1113
    %v1118 = vmax.f32 %v1114, 0.0
    %v1119 = vmax.f32 %v1115, 0.0
    %v1120 = vmax.f32 %v1116, 0.0
    %v1121 = vmax.f32 %v1117, 0.0
    %v1122 = vadd.f32 %v1080, %v1118
    %v1123 = vadd.f32 %v1081, %v1119
    %v1124 = vadd.f32 %v1082, %v1120
    %v1125 = vadd.f32 %v1083, %v1121
    %v1126 = vmul.f32 %v985, %v214
    %v1127 = vmul.f32 %v986, %v214
    %v1128 = vmul.f32 %v987, %v214
    %v1129 = vmul.f32 %v988, %v214
    %s1130 = sld [smem:[#allocation4 + $0x203]]
    %v1131 = vstv %s1130
    %v1132 = vadd.f32 %v1126, %v1131
    %v1133 = vadd.f32 %v1127, %v1131
    %v1134 = vadd.f32 %v1128, %v1131
    %v1135 = vadd.f32 %v1129, %v1131
    %v1136 = vmul.f32 %v990, %v225
    %v1137 = vmul.f32 %v991, %v225
    %v1138 = vmul.f32 %v992, %v225
    %v1139 = vmul.f32 %v993, %v225
    %v1140 = vadd.f32 %v1132, %v1136
    %v1141 = vadd.f32 %v1133, %v1137
    %v1142 = vadd.f32 %v1134, %v1138
    %v1143 = vadd.f32 %v1135, %v1139
    %v1144 = vmul.f32 %v995, %v234
    %v1145 = vmul.f32 %v996, %v234
    %v1146 = vmul.f32 %v997, %v234
    %v1147 = vmul.f32 %v998, %v234
    %v1148 = vadd.f32 %v1140, %v1144
    %v1149 = vadd.f32 %v1141, %v1145
    %v1150 = vadd.f32 %v1142, %v1146
    %v1151 = vadd.f32 %v1143, %v1147
    %v1152 = vmul.f32 %v1000, %v243
    %v1153 = vmul.f32 %v1001, %v243
    %v1154 = vmul.f32 %v1002, %v243
    %v1155 = vmul.f32 %v1003, %v243
    %v1156 = vadd.f32 %v1148, %v1152
    %v1157 = vadd.f32 %v1149, %v1153
    %v1158 = vadd.f32 %v1150, %v1154
    %v1159 = vadd.f32 %v1151, %v1155
    %v1160 = vmax.f32 %v1156, 0.0
    %v1161 = vmax.f32 %v1157, 0.0
    %v1162 = vmax.f32 %v1158, 0.0
    %v1163 = vmax.f32 %v1159, 0.0
    %v1164 = vadd.f32 %v1122, %v1160
    %v1165 = vadd.f32 %v1123, %v1161
    %v1166 = vadd.f32 %v1124, %v1162
    %v1167 = vadd.f32 %v1125, %v1163
    %v1168 = vmul.f32 %v985, %v260
    %v1169 = vmul.f32 %v986, %v260
    %v1170 = vmul.f32 %v987, %v260
    %v1171 = vmul.f32 %v988, %v260
    %s1172 = sld [smem:[#allocation4 + $0x204]]
    %v1173 = vstv %s1172
    %v1174 = vadd.f32 %v1168, %v1173
    %v1175 = vadd.f32 %v1169, %v1173
    %v1176 = vadd.f32 %v1170, %v1173
    %v1177 = vadd.f32 %v1171, %v1173
    %v1178 = vmul.f32 %v990, %v271
    %v1179 = vmul.f32 %v991, %v271
    %v1180 = vmul.f32 %v992, %v271
    %v1181 = vmul.f32 %v993, %v271
    %v1182 = vadd.f32 %v1174, %v1178
    %v1183 = vadd.f32 %v1175, %v1179
    %v1184 = vadd.f32 %v1176, %v1180
    %v1185 = vadd.f32 %v1177, %v1181
    %v1186 = vmul.f32 %v995, %v280
    %v1187 = vmul.f32 %v996, %v280
    %v1188 = vmul.f32 %v997, %v280
    %v1189 = vmul.f32 %v998, %v280
    %v1190 = vadd.f32 %v1182, %v1186
    %v1191 = vadd.f32 %v1183, %v1187
    %v1192 = vadd.f32 %v1184, %v1188
    %v1193 = vadd.f32 %v1185, %v1189
    %v1194 = vmul.f32 %v1000, %v289
    %v1195 = vmul.f32 %v1001, %v289
    %v1196 = vmul.f32 %v1002, %v289
    %v1197 = vmul.f32 %v1003, %v289
    %v1198 = vadd.f32 %v1190, %v1194
    %v1199 = vadd.f32 %v1191, %v1195
    %v1200 = vadd.f32 %v1192, %v1196
    %v1201 = vadd.f32 %v1193, %v1197
    %v1202 = vmax.f32 %v1198, 0.0
    %v1203 = vmax.f32 %v1199, 0.0
    %v1204 = vmax.f32 %v1200, 0.0
    %v1205 = vmax.f32 %v1201, 0.0
    %v1206 = vadd.f32 %v1164, %v1202
    %v1207 = vadd.f32 %v1165, %v1203
    %v1208 = vadd.f32 %v1166, %v1204
    %v1209 = vadd.f32 %v1167, %v1205
    %vm1210 = vcmp.gt.f32.partialorder %v528, %v302
    %vm1211 = vcmp.gt.f32.partialorder %v529, %v303
    %vm1212 = vcmp.gt.f32.partialorder %v530, %v304
    %vm1213 = vcmp.gt.f32.partialorder %v531, %v305
    %v1214 = vsel %vm1210, %v528, %v302
    %v1215 = vsel %vm1211, %v529, %v303
    %v1216 = vsel %vm1212, %v530, %v304
    %v1217 = vsel %vm1213, %v531, %v305
    %v1218 = vsel %vm1210, 1, 0
    %v1219 = vsel %vm1211, 1, 0
    %v1220 = vsel %vm1212, 1, 0
    %v1221 = vsel %vm1213, 1, 0
    %v1222 = vsel %vm1210, %v302, %v528
    %v1223 = vsel %vm1211, %v303, %v529
    %v1224 = vsel %vm1212, %v304, %v530
    %v1225 = vsel %vm1213, %v305, %v531
    %v1226 = vsel %vm1210, 0, 1
    %v1227 = vsel %vm1211, 0, 1
    %v1228 = vsel %vm1212, 0, 1
    %v1229 = vsel %vm1213, 0, 1
    %vm1230 = vcmp.gt.f32.partialorder %v754, %v1222
    %vm1231 = vcmp.gt.f32.partialorder %v755, %v1223
    %vm1232 = vcmp.gt.f32.partialorder %v756, %v1224
    %vm1233 = vcmp.gt.f32.partialorder %v757, %v1225
    %v1234 = vsel %vm1230, %v754, %v1222
    %v1235 = vsel %vm1231, %v755, %v1223
    %v1236 = vsel %vm1232, %v756, %v1224
    %v1237 = vsel %vm1233, %v757, %v1225
    %v1238 = vsel %vm1230, 2, %v1226
    %v1239 = vsel %vm1231, 2, %v1227
    %v1240 = vsel %vm1232, 2, %v1228
    %v1241 = vsel %vm1233, 2, %v1229
    %v1242 = vsel %vm1230, %v1222, %v754
    %v1243 = vsel %vm1231, %v1223, %v755
    %v1244 = vsel %vm1232, %v1224, %v756
    %v1245 = vsel %vm1233, %v1225, %v757
    %v1246 = vsel %vm1230, %v1226, 2
    %v1247 = vsel %vm1231, %v1227, 2
    %v1248 = vsel %vm1232, %v1228, 2
    %v1249 = vsel %vm1233, %v1229, 2
    %vm1250 = vcmp.gt.f32.partialorder %v1234, %v1214
    %vm1251 = vcmp.gt.f32.partialorder %v1235, %v1215
    %vm1252 = vcmp.gt.f32.partialorder %v1236, %v1216
    %vm1253 = vcmp.gt.f32.partialorder %v1237, %v1217
    %v1254 = vsel %vm1250, %v1234, %v1214
    %v1255 = vsel %vm1251, %v1235, %v1215
    %v1256 = vsel %vm1252, %v1236, %v1216
    %v1257 = vsel %vm1253, %v1237, %v1217
    %v1258 = vsel %vm1250, %v1238, %v1218
    %v1259 = vsel %vm1251, %v1239, %v1219
    %v1260 = vsel %vm1252, %v1240, %v1220
    %v1261 = vsel %vm1253, %v1241, %v1221
    %v1262 = vsel %vm1250, %v1214, %v1234
    %v1263 = vsel %vm1251, %v1215, %v1235
    %v1264 = vsel %vm1252, %v1216, %v1236
    %v1265 = vsel %vm1253, %v1217, %v1237
    %v1266 = vsel %vm1250, %v1218, %v1238
    %v1267 = vsel %vm1251, %v1219, %v1239
    %v1268 = vsel %vm1252, %v1220, %v1240
    %v1269 = vsel %vm1253, %v1221, %v1241
    %vm1270 = vcmp.gt.f32.partialorder %v980, %v1254
    %vm1271 = vcmp.gt.f32.partialorder %v981, %v1255
    %vm1272 = vcmp.gt.f32.partialorder %v982, %v1256
    %vm1273 = vcmp.gt.f32.partialorder %v983, %v1257
    %vm1274 = vcmp.gt.f32.partialorder %v980, %v1262
    %vm1275 = vcmp.gt.f32.partialorder %v981, %v1263
    %vm1276 = vcmp.gt.f32.partialorder %v982, %v1264
    %vm1277 = vcmp.gt.f32.partialorder %v983, %v1265
    %vm1278 = vcmp.gt.f32.partialorder %v980, %v1242
    %vm1279 = vcmp.gt.f32.partialorder %v981, %v1243
    %vm1280 = vcmp.gt.f32.partialorder %v982, %v1244
    %vm1281 = vcmp.gt.f32.partialorder %v983, %v1245
    %v1282 = vsel %vm1270, %v980, %v1254
    %v1283 = vsel %vm1271, %v981, %v1255
    %v1284 = vsel %vm1272, %v982, %v1256
    %v1285 = vsel %vm1273, %v983, %v1257
    %v1286 = vsel %vm1270, 3, %v1258
    %v1287 = vsel %vm1271, 3, %v1259
    %v1288 = vsel %vm1272, 3, %v1260
    %v1289 = vsel %vm1273, 3, %v1261
    %v1290 = vsel %vm1274, %v980, %v1262
    %v1291 = vsel %vm1275, %v981, %v1263
    %v1292 = vsel %vm1276, %v982, %v1264
    %v1293 = vsel %vm1277, %v983, %v1265
    %v1294 = vsel %vm1270, %v1254, %v1290
    %v1295 = vsel %vm1271, %v1255, %v1291
    %v1296 = vsel %vm1272, %v1256, %v1292
    %v1297 = vsel %vm1273, %v1257, %v1293
    %v1298 = vsel %vm1274, 3, %v1266
    %v1299 = vsel %vm1275, 3, %v1267
    %v1300 = vsel %vm1276, 3, %v1268
    %v1301 = vsel %vm1277, 3, %v1269
    %v1302 = vsel %vm1270, %v1258, %v1298
    %v1303 = vsel %vm1271, %v1259, %v1299
    %v1304 = vsel %vm1272, %v1260, %v1300
    %v1305 = vsel %vm1273, %v1261, %v1301
    %v1306 = vsel %vm1278, %v980, %v1242
    %v1307 = vsel %vm1279, %v981, %v1243
    %v1308 = vsel %vm1280, %v982, %v1244
    %v1309 = vsel %vm1281, %v983, %v1245
    %v1310 = vsel %vm1274, %v1262, %v1306
    %v1311 = vsel %vm1275, %v1263, %v1307
    %v1312 = vsel %vm1276, %v1264, %v1308
    %v1313 = vsel %vm1277, %v1265, %v1309
    %v1314 = vsel %vm1278, 3, %v1246
    %v1315 = vsel %vm1279, 3, %v1247
    %v1316 = vsel %vm1280, 3, %v1248
    %v1317 = vsel %vm1281, 3, %v1249
    %v1318 = vsel %vm1274, %v1266, %v1314
    %v1319 = vsel %vm1275, %v1267, %v1315
    %v1320 = vsel %vm1276, %v1268, %v1316
    %v1321 = vsel %vm1277, %v1269, %v1317
    %vm1322 = vcmp.gt.f32.partialorder %v1206, %v1282
    %vm1323 = vcmp.gt.f32.partialorder %v1207, %v1283
    %vm1324 = vcmp.gt.f32.partialorder %v1208, %v1284
    %vm1325 = vcmp.gt.f32.partialorder %v1209, %v1285
    %vm1326 = vcmp.gt.f32.partialorder %v1206, %v1294
    %vm1327 = vcmp.gt.f32.partialorder %v1207, %v1295
    %vm1328 = vcmp.gt.f32.partialorder %v1208, %v1296
    %vm1329 = vcmp.gt.f32.partialorder %v1209, %v1297
    %vm1330 = vcmp.gt.f32.partialorder %v1206, %v1310
    %vm1331 = vcmp.gt.f32.partialorder %v1207, %v1311
    %vm1332 = vcmp.gt.f32.partialorder %v1208, %v1312
    %vm1333 = vcmp.gt.f32.partialorder %v1209, %v1313
    %v1334 = vsel %vm1322, %v1206, %v1282
    %v1335 = vsel %vm1323, %v1207, %v1283
    %v1336 = vsel %vm1324, %v1208, %v1284
    %v1337 = vsel %vm1325, %v1209, %v1285
    %v1338 = vsel %vm1322, 4, %v1286
    %v1339 = vsel %vm1323, 4, %v1287
    %v1340 = vsel %vm1324, 4, %v1288
    %v1341 = vsel %vm1325, 4, %v1289
    %v1342 = vsel %vm1326, %v1206, %v1294
    %v1343 = vsel %vm1327, %v1207, %v1295
    %v1344 = vsel %vm1328, %v1208, %v1296
    %v1345 = vsel %vm1329, %v1209, %v1297
    %v1346 = vsel %vm1322, %v1282, %v1342
    %v1347 = vsel %vm1323, %v1283, %v1343
    %v1348 = vsel %vm1324, %v1284, %v1344
    %v1349 = vsel %vm1325, %v1285, %v1345
    %v1350 = vsel %vm1326, 4, %v1302
    %v1351 = vsel %vm1327, 4, %v1303
    %v1352 = vsel %vm1328, 4, %v1304
    %v1353 = vsel %vm1329, 4, %v1305
    %v1354 = vsel %vm1322, %v1286, %v1350
    %v1355 = vsel %vm1323, %v1287, %v1351
    %v1356 = vsel %vm1324, %v1288, %v1352
    %v1357 = vsel %vm1325, %v1289, %v1353
    %v1358 = vsel %vm1330, %v1206, %v1310
    %v1359 = vsel %vm1331, %v1207, %v1311
    %v1360 = vsel %vm1332, %v1208, %v1312
    %v1361 = vsel %vm1333, %v1209, %v1313
    %v1362 = vsel %vm1326, %v1294, %v1358
    %v1363 = vsel %vm1327, %v1295, %v1359
    %v1364 = vsel %vm1328, %v1296, %v1360
    %v1365 = vsel %vm1329, %v1297, %v1361
    %v1366 = vsel %vm1330, 4, %v1318
    %v1367 = vsel %vm1331, 4, %v1319
    %v1368 = vsel %vm1332, 4, %v1320
    %v1369 = vsel %vm1333, 4, %v1321
    %v1370 = vsel %vm1326, %v1302, %v1366
    %v1371 = vsel %vm1327, %v1303, %v1367
    %v1372 = vsel %vm1328, %v1304, %v1368
    %v1373 = vsel %vm1329, %v1305, %v1369
    %1374 = vst [vmem:[%s3] sm:$0xff] %v1334
    %1375 = vst [vmem:[%s3 + $0x8] sm:$0xff] %v1335
    %1376 = vst [vmem:[%s3 + $0x10] sm:$0xff] %v1336
    %1377 = vst [vmem:[%s3 + $0x18] sm:$0xff] %v1337
    %s1378 = scalar_lea.vmem %s3, 32
    %1379 = vst [vmem:[%s1378] sm:$0xff] %v1346
    %1380 = vst [vmem:[%s1378 + $0x8] sm:$0xff] %v1347
    %1381 = vst [vmem:[%s1378 + $0x10] sm:$0xff] %v1348
    %1382 = vst [vmem:[%s1378 + $0x18] sm:$0xff] %v1349
    %s1383 = scalar_lea.vmem %s3, 64
    %1384 = vst [vmem:[%s1383] sm:$0xff] %v1362
    %1385 = vst [vmem:[%s1383 + $0x8] sm:$0xff] %v1363
    %1386 = vst [vmem:[%s1383 + $0x10] sm:$0xff] %v1364
    %1387 = vst [vmem:[%s1383 + $0x18] sm:$0xff] %v1365
    %v1388 = vpack.c.b16 %v1338, %v1338
    %v1389 = vpack.c.b8 %v1388, %v1388
    %v1390 = vpack.c.b16 %v1339, %v1339
    %v1391 = vpack.c.b8 %v1390, %v1390
    %v1392 = vpack.c.b16 %v1340, %v1340
    %v1393 = vpack.c.b8 %v1392, %v1392
    %v1394 = vpack.c.b16 %v1341, %v1341
    %v1395 = vpack.c.b8 %v1394, %v1394
    %1396 = vst [vmem:[%s4] sm:$0x3] %v1389
    %1397 = vst [vmem:[%s4 + $0x2] sm:$0x3] %v1391
    %1398 = vst [vmem:[%s4 + $0x4] sm:$0x3] %v1393
    %1399 = vst [vmem:[%s4 + $0x6] sm:$0x3] %v1395
    %v1400 = vpack.c.b16 %v1354, %v1354
    %v1401 = vpack.c.b8 %v1400, %v1400
    %v1402 = vpack.c.b16 %v1355, %v1355
    %v1403 = vpack.c.b8 %v1402, %v1402
    %v1404 = vpack.c.b16 %v1356, %v1356
    %v1405 = vpack.c.b8 %v1404, %v1404
    %v1406 = vpack.c.b16 %v1357, %v1357
    %v1407 = vpack.c.b8 %v1406, %v1406
    %s1408 = scalar_lea.vmem %s4, 8
    %1409 = vst [vmem:[%s1408] sm:$0x3] %v1401
    %1410 = vst [vmem:[%s1408 + $0x2] sm:$0x3] %v1403
    %1411 = vst [vmem:[%s1408 + $0x4] sm:$0x3] %v1405
    %1412 = vst [vmem:[%s1408 + $0x6] sm:$0x3] %v1407
    %v1413 = vpack.c.b16 %v1370, %v1370
    %v1414 = vpack.c.b8 %v1413, %v1413
    %v1415 = vpack.c.b16 %v1371, %v1371
    %v1416 = vpack.c.b8 %v1415, %v1415
    %v1417 = vpack.c.b16 %v1372, %v1372
    %v1418 = vpack.c.b8 %v1417, %v1417
    %v1419 = vpack.c.b16 %v1373, %v1373
    %v1420 = vpack.c.b8 %v1419, %v1419
    %s1421 = scalar_lea.vmem %s4, 16
    %1422 = vst [vmem:[%s1421] sm:$0x3] %v1414
    %1423 = vst [vmem:[%s1421 + $0x2] sm:$0x3] %v1416
    %1424 = vst [vmem:[%s1421 + $0x4] sm:$0x3] %v1418
    %1425 = vst [vmem:[%s1421 + $0x6] sm:$0x3] %v1420
    // Predicated region
    $region22: #{mymodule_forward.1} parent=1 // pred_check
      _
    $region23: #{mymodule_forward.1} parent=1 // pred_check_branch
      %1427 = sbr.rel (0) target = $region25
    $region24: #{mymodule_forward.1} parent=1 // pred_region
      _
    $region25: #{mymodule_forward.1} parent=1 // pred_fallthru
      _
    // Predicated region
    $region26: #{mymodule_forward.1} parent=1 // pred_check
      _
    $region27: #{mymodule_forward.1} parent=1 // pred_check_branch
      %1429 = sbr.rel (0) target = $region29
    $region28: #{mymodule_forward.1} parent=1 // pred_region
      _
    $region29: #{mymodule_forward.1} parent=1 // pred_fallthru
      _
    // Predicated region
    $region30: #{mymodule_forward.1} parent=1 // pred_check
      _
    $region31: #{mymodule_forward.1} parent=1 // pred_check_branch
      %1431 = sbr.rel (0) target = $region33
    $region32: #{mymodule_forward.1} parent=1 // pred_region
      _
    $region33: #{mymodule_forward.1} parent=1 // pred_fallthru
      _
    // Predicated region
    $region34: #{mymodule_forward.1} parent=1 // pred_check
      _
    $region35: #{mymodule_forward.1} parent=1 // pred_check_branch
      %1433 = sbr.rel (0) target = $region37
    $region36: #{mymodule_forward.1} parent=1 // pred_region
      _
    $region37: #{mymodule_forward.1} parent=1 // pred_fallthru
      _
    %1434 = vsyncpa [#allocation3], 1
    %1435 = vsyncpa [#allocation5], 1

</llo_original>
